<compile_context>
chip_gen: v6e
topology: v6e:2x2x1
jax: 0.10.0
libtpu: 0.0.40
codegen_flags: <defaults>
</compile_context>

<pallas_src>
import functools

import jax
import jax.numpy as jnp
from jax.experimental import pallas as pl
from jax.experimental.pallas import tpu as pltpu


# ------------------------------ fused Pallas kernel ------------------------------ #

def _fused_conv_bn_relu_kernel(taps_ref, w_ref, o_ref, *, n_taps, inv_m, eps):
    """Fused conv (sum of per-tap matmuls) + BatchNorm(batch stats) + ReLU.

    taps_ref: (T, Cin, M) f32  -- per-tap input planes, channels-major, M = N*Ho*Wo
    w_ref:    (T, Cout, Cin) f32 -- per-tap conv weights
    o_ref:    (Cout, M) f32
    """
    # Conv: accumulate per-tap matmuls on the MXU (bf16 in, f32 accumulation).
    acc = jnp.dot(w_ref[0].astype(jnp.bfloat16),
                  taps_ref[0].astype(jnp.bfloat16),
                  preferred_element_type=jnp.float32)
    for t in range(1, n_taps):  # static unroll (T = 1 or 9)
        acc = acc + jnp.dot(w_ref[t].astype(jnp.bfloat16),
                            taps_ref[t].astype(jnp.bfloat16),
                            preferred_element_type=jnp.float32)

    # BatchNorm2d training-mode statistics: per-channel (rows) mean / biased variance
    # over the lane axis (M = N*Ho*Wo).  gamma=1, beta=0 (PyTorch defaults).
    mean = jnp.sum(acc, axis=1, keepdims=True) * inv_m          # (Cout, 1)
    centered = acc - mean
    var = jnp.sum(centered * centered, axis=1, keepdims=True) * inv_m
    scale = jax.lax.rsqrt(var + eps)                            # EUP rsqrt, f32

    # Normalize + ReLU (all f32 elementwise; lane-dense since M is the last dim).
    o_ref[...] = jnp.maximum(centered * scale, 0.0)


# ------------------------------- stage wrapper ----------------------------------- #

def basic_conv2d_cm(x_cm, shape_nhw, w, kernel_size, stride, padding, eps=1e-3):
    """One fused BasicConv2d stage in channels-major layout.

    x_cm:      (Cin, N*H*W) f32 activations (row index = n*H*W + h*W + w)
    shape_nhw: (N, H, W) static ints
    w:         (Cout, Cin, k, k) f32 conv weight
    returns    ((Cout, N*Ho*Wo) f32, (N, Ho, Wo))
    """
    n, h, w_sp = shape_nhw
    cout, cin, _, _ = w.shape
    k = kernel_size

    if k == 1 and stride == 1 and padding == 0:
        ho, wo = h, w_sp
        taps = x_cm[None]                          # (1, Cin, M), no data movement
        wt = w.reshape(cout, cin)[None]            # (1, Cout, Cin)
    else:
        # Gather the k*k shifted/strided tap planes once in the wrapper (small XLA
        # pass); the conv itself is done in-kernel as accumulated matmuls.
        x4 = x_cm.reshape(cin, n, h, w_sp)
        xp = jnp.pad(x4, ((0, 0), (0, 0), (padding, padding), (padding, padding)))
        ho = (h + 2 * padding - k) // stride + 1
        wo = (w_sp + 2 * padding - k) // stride + 1
        planes, wts = [], []
        for ky in range(k):
            for kx in range(k):
                sl = xp[:, :, ky:ky + stride * ho:stride, kx:kx + stride * wo:stride]
                planes.append(sl.reshape(cin, n * ho * wo))
                wts.append(w[:, :, ky, kx])
        taps = jnp.stack(planes, axis=0)           # (k*k, Cin, Mo)
        wt = jnp.stack(wts, axis=0)                # (k*k, Cout, Cin)

    mo = n * ho * wo
    kernel = functools.partial(_fused_conv_bn_relu_kernel,
                               n_taps=int(taps.shape[0]),
                               inv_m=1.0 / float(mo),
                               eps=float(eps))
    out = pl.pallas_call(
        kernel,
        out_shape=jax.ShapeDtypeStruct((cout, mo), jnp.float32),
        grid=(1,),
        in_specs=[
            pl.BlockSpec(tuple(taps.shape), lambda i: (0, 0, 0)),
            pl.BlockSpec(tuple(wt.shape), lambda i: (0, 0, 0)),
        ],
        out_specs=pl.BlockSpec((cout, mo), lambda i: (0, 0)),
        compiler_params=pltpu.CompilerParams(
            dimension_semantics=("arbitrary",)),
    )(taps, wt)
    return out, (n, ho, wo)


# ------------------------------ module-level glue --------------------------------- #

def xavier_uniform(key, shape):
    # shape = (Cout, Cin, kh, kw); matches torch.nn.init.xavier_uniform_
    fan_out = shape[0] * shape[2] * shape[3]
    fan_in = shape[1] * shape[2] * shape[3]
    a = (6.0 / (fan_in + fan_out)) ** 0.5
    return jax.random.uniform(key, shape, jnp.float32, -a, a)


def init_downsample(key, input_channel, output_channels):
    params = []
    inc = input_channel
    for outc in output_channels:
        outc1 = outc // 2
        key, k1, k2 = jax.random.split(key, 3)
        w1 = xavier_uniform(k1, (outc1, inc, 1, 1))   # 1x1 conv
        w2 = xavier_uniform(k2, (outc, outc1, 3, 3))  # 3x3 conv
        params.append((w1, w2))
        inc = outc
    return params


def downsample_forward(x, params, strides=None, paddings=None):
    """Equivalent of DownSample.forward: x is NCHW, returns a list of NCHW maps."""
    if strides is None:
        strides = [2] * len(params)
    if paddings is None:
        paddings = [1] * len(params)

    n, c, h, w_sp = x.shape
    # Enter channels-major layout once at the module boundary.
    x_cm = x.transpose(1, 0, 2, 3).reshape(c, n * h * w_sp)
    shape = (n, h, w_sp)

    outputs = []
    for (w1, w2), s, p in zip(params, strides, paddings):
        x_cm, shape = basic_conv2d_cm(x_cm, shape, w1, kernel_size=1, stride=1, padding=0)
        x_cm, shape = basic_conv2d_cm(x_cm, shape, w2, kernel_size=3, stride=s, padding=p)
        nb, ho, wo = shape
        cout = w2.shape[0]
        # Single NCHW conversion per returned feature map (module boundary only).
        outputs.append(x_cm.reshape(cout, nb, ho, wo).transpose(1, 0, 2, 3))
    return outputs


if __name__ == "__main__":
    key = jax.random.PRNGKey(0)
    k_x, k_p = jax.random.split(key)

    # Small shapes: DownSample(input_channel=4, output_channels=[8, 16])
    x = jax.random.normal(k_x, (2, 4, 16, 16), dtype=jnp.float32)
    params = init_downsample(k_p, input_channel=4, output_channels=[8, 16])

    outs = jax.jit(downsample_forward)(x, params)
    outs = [jax.block_until_ready(o) for o in outs]

    assert outs[0].shape == (2, 8, 8, 8)
    assert outs[1].shape == (2, 16, 4, 4)
    assert all(bool(jnp.all(jnp.isfinite(o))) for o in outs)
    print("KERNEL_OK")
</pallas_src>

<mosaic_0001>
module attributes {stable_mosaic.version = 11 : i64} {
  func.func @_fused_conv_bn_relu_kernel(%arg0: i32, %arg1: memref<1x4x512xf32, #tpu.memory_space<vmem>>, %arg2: memref<1x4x4xf32, #tpu.memory_space<vmem>>, %arg3: memref<4x512xf32, #tpu.memory_space<vmem>>) attributes {dimension_semantics = [#tpu.dimension_semantics<arbitrary>], iteration_bounds = array<i64: 1>, scalar_prefetch = 0 : i64, scratch_operands = 0 : i64, tpu.core_type = #tpu.core_type<tc>, window_params = [{pipeline_mode = #tpu.pipeline_mode<synchronous>, transform_indices = @transform_0, window_bounds = array<i64: 1, 4, 512>}, {pipeline_mode = #tpu.pipeline_mode<synchronous>, transform_indices = @transform_1, window_bounds = array<i64: 1, 4, 4>}, {pipeline_mode = #tpu.pipeline_mode<synchronous>, transform_indices = @transform_2, window_bounds = array<i64: 4, 512>}]} {
    %c0 = arith.constant 0 : index
    %c0_0 = arith.constant 0 : index
    %c0_1 = arith.constant 0 : index
    %0 = vector.load %arg2[%c0, %c0_0, %c0_1] : memref<1x4x4xf32, #tpu.memory_space<vmem>>, vector<1x4x4xf32>
    %1 = vector.shape_cast %0 : vector<1x4x4xf32> to vector<4x4xf32>
    %2 = arith.truncf %1 : vector<4x4xf32> to vector<4x4xbf16>
    %c0_2 = arith.constant 0 : index
    %c0_3 = arith.constant 0 : index
    %c0_4 = arith.constant 0 : index
    %3 = vector.load %arg1[%c0_2, %c0_3, %c0_4] : memref<1x4x512xf32, #tpu.memory_space<vmem>>, vector<1x4x512xf32>
    %4 = vector.shape_cast %3 : vector<1x4x512xf32> to vector<4x512xf32>
    %5 = arith.truncf %4 : vector<4x512xf32> to vector<4x512xbf16>
    %cst = arith.constant dense<0.000000e+00> : vector<4x512xf32>
    %6 = tpu.matmul %2, %5, %cst {dimension_numbers = #tpu.dot_dimension_numbers<[1], [0], [0], [1], [0, 0, 1, 1], [], []>} : vector<4x4xbf16>, vector<4x512xbf16>, vector<4x512xf32> -> vector<4x512xf32>
    %cst_5 = arith.constant dense<0.000000e+00> : vector<4xf32>
    %7 = vector.multi_reduction <add>, %6, %cst_5 [1] : vector<4x512xf32> to vector<4xf32>
    %8 = vector.shape_cast %7 : vector<4xf32> to vector<4x1xf32>
    %cst_6 = arith.constant 0.001953125 : f32
    %9 = vector.broadcast %cst_6 : f32 to vector<4x1xf32>
    %10 = arith.mulf %8, %9 : vector<4x1xf32>
    %11 = vector.broadcast %10 : vector<4x1xf32> to vector<4x512xf32>
    %12 = arith.subf %6, %11 : vector<4x512xf32>
    %13 = arith.mulf %12, %12 : vector<4x512xf32>
    %cst_7 = arith.constant dense<0.000000e+00> : vector<4xf32>
    %14 = vector.multi_reduction <add>, %13, %cst_7 [1] : vector<4x512xf32> to vector<4xf32>
    %15 = vector.shape_cast %14 : vector<4xf32> to vector<4x1xf32>
    %cst_8 = arith.constant 0.001953125 : f32
    %16 = vector.broadcast %cst_8 : f32 to vector<4x1xf32>
    %17 = arith.mulf %15, %16 : vector<4x1xf32>
    %cst_9 = arith.constant 1.000000e-03 : f32
    %18 = vector.broadcast %cst_9 : f32 to vector<4x1xf32>
    %19 = arith.addf %17, %18 : vector<4x1xf32>
    %20 = math.rsqrt %19 : vector<4x1xf32>
    %21 = vector.broadcast %20 : vector<4x1xf32> to vector<4x512xf32>
    %22 = arith.mulf %12, %21 : vector<4x512xf32>
    %cst_10 = arith.constant 0.000000e+00 : f32
    %23 = vector.broadcast %cst_10 : f32 to vector<4x512xf32>
    %24 = arith.maximumf %22, %23 : vector<4x512xf32>
    %c0_11 = arith.constant 0 : index
    %c0_12 = arith.constant 0 : index
    %25 = vector.load %arg3[%c0_11, %c0_12] : memref<4x512xf32, #tpu.memory_space<vmem>>, vector<4x512xf32>
    tpu.vector_store %arg3[%c0_11, %c0_12], %24 {strides = array<i32>} : memref<4x512xf32, #tpu.memory_space<vmem>>, vector<4x512xf32>,
    return
  }
  func.func @transform_0(%arg0: i32) -> (i32, i32, i32) {
    %c0_i32 = arith.constant 0 : i32
    %c0_i32_0 = arith.constant 0 : i32
    %c0_i32_1 = arith.constant 0 : i32
    %c0_i32_2 = arith.constant 0 : i32
    return %c0_i32, %c0_i32_0, %c0_i32_1 : i32, i32, i32
  }
  func.func @transform_1(%arg0: i32) -> (i32, i32, i32) {
    %c0_i32 = arith.constant 0 : i32
    %c0_i32_0 = arith.constant 0 : i32
    %c0_i32_1 = arith.constant 0 : i32
    %c0_i32_2 = arith.constant 0 : i32
    return %c0_i32, %c0_i32_0, %c0_i32_1 : i32, i32, i32
  }
  func.func @transform_2(%arg0: i32) -> (i32, i32) {
    %c0_i32 = arith.constant 0 : i32
    %c0_i32_0 = arith.constant 0 : i32
    %c0_i32_1 = arith.constant 0 : i32
    return %c0_i32, %c0_i32_0 : i32, i32
  }
}

module attributes {stable_mosaic.version = 11 : i64} {
  func.func @_fused_conv_bn_relu_kernel(%arg0: i32, %arg1: memref<9x4x128xf32, #tpu.memory_space<vmem>>, %arg2: memref<9x8x4xf32, #tpu.memory_space<vmem>>, %arg3: memref<8x128xf32, #tpu.memory_space<vmem>>) attributes {dimension_semantics = [#tpu.dimension_semantics<arbitrary>], iteration_bounds = array<i64: 1>, scalar_prefetch = 0 : i64, scratch_operands = 0 : i64, tpu.core_type = #tpu.core_type<tc>, window_params = [{pipeline_mode = #tpu.pipeline_mode<synchronous>, transform_indices = @transform_0, window_bounds = array<i64: 9, 4, 128>}, {pipeline_mode = #tpu.pipeline_mode<synchronous>, transform_indices = @transform_1, window_bounds = array<i64: 9, 8, 4>}, {pipeline_mode = #tpu.pipeline_mode<synchronous>, transform_indices = @transform_2, window_bounds = array<i64: 8, 128>}]} {
    %c0 = arith.constant 0 : index
    %c0_0 = arith.constant 0 : index
    %c0_1 = arith.constant 0 : index
    %0 = vector.load %arg2[%c0, %c0_0, %c0_1] : memref<9x8x4xf32, #tpu.memory_space<vmem>>, vector<1x8x4xf32>
    %1 = vector.shape_cast %0 : vector<1x8x4xf32> to vector<8x4xf32>
    %2 = arith.truncf %1 : vector<8x4xf32> to vector<8x4xbf16>
    %c0_2 = arith.constant 0 : index
    %c0_3 = arith.constant 0 : index
    %c0_4 = arith.constant 0 : index
    %3 = vector.load %arg1[%c0_2, %c0_3, %c0_4] : memref<9x4x128xf32, #tpu.memory_space<vmem>>, vector<1x4x128xf32>
    %4 = vector.shape_cast %3 : vector<1x4x128xf32> to vector<4x128xf32>
    %5 = arith.truncf %4 : vector<4x128xf32> to vector<4x128xbf16>
    %cst = arith.constant dense<0.000000e+00> : vector<8x128xf32>
    %6 = tpu.matmul %2, %5, %cst {dimension_numbers = #tpu.dot_dimension_numbers<[1], [0], [0], [1], [0, 0, 1, 1], [], []>} : vector<8x4xbf16>, vector<4x128xbf16>, vector<8x128xf32> -> vector<8x128xf32>
    %c1 = arith.constant 1 : index
    %c0_5 = arith.constant 0 : index
    %c0_6 = arith.constant 0 : index
    %7 = vector.load %arg2[%c1, %c0_5, %c0_6] : memref<9x8x4xf32, #tpu.memory_space<vmem>>, vector<1x8x4xf32>
    %8 = vector.shape_cast %7 : vector<1x8x4xf32> to vector<8x4xf32>
    %9 = arith.truncf %8 : vector<8x4xf32> to vector<8x4xbf16>
    %c1_7 = arith.constant 1 : index
    %c0_8 = arith.constant 0 : index
    %c0_9 = arith.constant 0 : index
    %10 = vector.load %arg1[%c1_7, %c0_8, %c0_9] : memref<9x4x128xf32, #tpu.memory_space<vmem>>, vector<1x4x128xf32>
    %11 = vector.shape_cast %10 : vector<1x4x128xf32> to vector<4x128xf32>
    %12 = arith.truncf %11 : vector<4x128xf32> to vector<4x128xbf16>
    %cst_10 = arith.constant dense<0.000000e+00> : vector<8x128xf32>
    %13 = tpu.matmul %9, %12, %cst_10 {dimension_numbers = #tpu.dot_dimension_numbers<[1], [0], [0], [1], [0, 0, 1, 1], [], []>} : vector<8x4xbf16>, vector<4x128xbf16>, vector<8x128xf32> -> vector<8x128xf32>
    %14 = arith.addf %6, %13 : vector<8x128xf32>
    %c2 = arith.constant 2 : index
    %c0_11 = arith.constant 0 : index
    %c0_12 = arith.constant 0 : index
    %15 = vector.load %arg2[%c2, %c0_11, %c0_12] : memref<9x8x4xf32, #tpu.memory_space<vmem>>, vector<1x8x4xf32>
    %16 = vector.shape_cast %15 : vector<1x8x4xf32> to vector<8x4xf32>
    %17 = arith.truncf %16 : vector<8x4xf32> to vector<8x4xbf16>
    %c2_13 = arith.constant 2 : index
    %c0_14 = arith.constant 0 : index
    %c0_15 = arith.constant 0 : index
    %18 = vector.load %arg1[%c2_13, %c0_14, %c0_15] : memref<9x4x128xf32, #tpu.memory_space<vmem>>, vector<1x4x128xf32>
    %19 = vector.shape_cast %18 : vector<1x4x128xf32> to vector<4x128xf32>
    %20 = arith.truncf %19 : vector<4x128xf32> to vector<4x128xbf16>
    %cst_16 = arith.constant dense<0.000000e+00> : vector<8x128xf32>
    %21 = tpu.matmul %17, %20, %cst_16 {dimension_numbers = #tpu.dot_dimension_numbers<[1], [0], [0], [1], [0, 0, 1, 1], [], []>} : vector<8x4xbf16>, vector<4x128xbf16>, vector<8x128xf32> -> vector<8x128xf32>
    %22 = arith.addf %14, %21 : vector<8x128xf32>
    %c3 = arith.constant 3 : index
    %c0_17 = arith.constant 0 : index
    %c0_18 = arith.constant 0 : index
    %23 = vector.load %arg2[%c3, %c0_17, %c0_18] : memref<9x8x4xf32, #tpu.memory_space<vmem>>, vector<1x8x4xf32>
    %24 = vector.shape_cast %23 : vector<1x8x4xf32> to vector<8x4xf32>
    %25 = arith.truncf %24 : vector<8x4xf32> to vector<8x4xbf16>
    %c3_19 = arith.constant 3 : index
    %c0_20 = arith.constant 0 : index
    %c0_21 = arith.constant 0 : index
    %26 = vector.load %arg1[%c3_19, %c0_20, %c0_21] : memref<9x4x128xf32, #tpu.memory_space<vmem>>, vector<1x4x128xf32>
    %27 = vector.shape_cast %26 : vector<1x4x128xf32> to vector<4x128xf32>
    %28 = arith.truncf %27 : vector<4x128xf32> to vector<4x128xbf16>
    %cst_22 = arith.constant dense<0.000000e+00> : vector<8x128xf32>
    %29 = tpu.matmul %25, %28, %cst_22 {dimension_numbers = #tpu.dot_dimension_numbers<[1], [0], [0], [1], [0, 0, 1, 1], [], []>} : vector<8x4xbf16>, vector<4x128xbf16>, vector<8x128xf32> -> vector<8x128xf32>
    %30 = arith.addf %22, %29 : vector<8x128xf32>
    %c4 = arith.constant 4 : index
    %c0_23 = arith.constant 0 : index
    %c0_24 = arith.constant 0 : index
    %31 = vector.load %arg2[%c4, %c0_23, %c0_24] : memref<9x8x4xf32, #tpu.memory_space<vmem>>, vector<1x8x4xf32>
    %32 = vector.shape_cast %31 : vector<1x8x4xf32> to vector<8x4xf32>
    %33 = arith.truncf %32 : vector<8x4xf32> to vector<8x4xbf16>
    %c4_25 = arith.constant 4 : index
    %c0_26 = arith.constant 0 : index
    %c0_27 = arith.constant 0 : index
    %34 = vector.load %arg1[%c4_25, %c0_26, %c0_27] : memref<9x4x128xf32, #tpu.memory_space<vmem>>, vector<1x4x128xf32>
    %35 = vector.shape_cast %34 : vector<1x4x128xf32> to vector<4x128xf32>
    %36 = arith.truncf %35 : vector<4x128xf32> to vector<4x128xbf16>
    %cst_28 = arith.constant dense<0.000000e+00> : vector<8x128xf32>
    %37 = tpu.matmul %33, %36, %cst_28 {dimension_numbers = #tpu.dot_dimension_numbers<[1], [0], [0], [1], [0, 0, 1, 1], [], []>} : vector<8x4xbf16>, vector<4x128xbf16>, vector<8x128xf32> -> vector<8x128xf32>
    %38 = arith.addf %30, %37 : vector<8x128xf32>
    %c5 = arith.constant 5 : index
    %c0_29 = arith.constant 0 : index
    %c0_30 = arith.constant 0 : index
    %39 = vector.load %arg2[%c5, %c0_29, %c0_30] : memref<9x8x4xf32, #tpu.memory_space<vmem>>, vector<1x8x4xf32>
    %40 = vector.shape_cast %39 : vector<1x8x4xf32> to vector<8x4xf32>
    %41 = arith.truncf %40 : vector<8x4xf32> to vector<8x4xbf16>
    %c5_31 = arith.constant 5 : index
    %c0_32 = arith.constant 0 : index
    %c0_33 = arith.constant 0 : index
    %42 = vector.load %arg1[%c5_31, %c0_32, %c0_33] : memref<9x4x128xf32, #tpu.memory_space<vmem>>, vector<1x4x128xf32>
    %43 = vector.shape_cast %42 : vector<1x4x128xf32> to vector<4x128xf32>
    %44 = arith.truncf %43 : vector<4x128xf32> to vector<4x128xbf16>
    %cst_34 = arith.constant dense<0.000000e+00> : vector<8x128xf32>
    %45 = tpu.matmul %41, %44, %cst_34 {dimension_numbers = #tpu.dot_dimension_numbers<[1], [0], [0], [1], [0, 0, 1, 1], [], []>} : vector<8x4xbf16>, vector<4x128xbf16>, vector<8x128xf32> -> vector<8x128xf32>
    %46 = arith.addf %38, %45 : vector<8x128xf32>
    %c6 = arith.constant 6 : index
    %c0_35 = arith.constant 0 : index
    %c0_36 = arith.constant 0 : index
    %47 = vector.load %arg2[%c6, %c0_35, %c0_36] : memref<9x8x4xf32, #tpu.memory_space<vmem>>, vector<1x8x4xf32>
    %48 = vector.shape_cast %47 : vector<1x8x4xf32> to vector<8x4xf32>
    %49 = arith.truncf %48 : vector<8x4xf32> to vector<8x4xbf16>
    %c6_37 = arith.constant 6 : index
    %c0_38 = arith.constant 0 : index
    %c0_39 = arith.constant 0 : index
    %50 = vector.load %arg1[%c6_37, %c0_38, %c0_39] : memref<9x4x128xf32, #tpu.memory_space<vmem>>, vector<1x4x128xf32>
    %51 = vector.shape_cast %50 : vector<1x4x128xf32> to vector<4x128xf32>
    %52 = arith.truncf %51 : vector<4x128xf32> to vector<4x128xbf16>
    %cst_40 = arith.constant dense<0.000000e+00> : vector<8x128xf32>
    %53 = tpu.matmul %49, %52, %cst_40 {dimension_numbers = #tpu.dot_dimension_numbers<[1], [0], [0], [1], [0, 0, 1, 1], [], []>} : vector<8x4xbf16>, vector<4x128xbf16>, vector<8x128xf32> -> vector<8x128xf32>
    %54 = arith.addf %46, %53 : vector<8x128xf32>
    %c7 = arith.constant 7 : index
    %c0_41 = arith.constant 0 : index
    %c0_42 = arith.constant 0 : index
    %55 = vector.load %arg2[%c7, %c0_41, %c0_42] : memref<9x8x4xf32, #tpu.memory_space<vmem>>, vector<1x8x4xf32>
    %56 = vector.shape_cast %55 : vector<1x8x4xf32> to vector<8x4xf32>
    %57 = arith.truncf %56 : vector<8x4xf32> to vector<8x4xbf16>
    %c7_43 = arith.constant 7 : index
    %c0_44 = arith.constant 0 : index
    %c0_45 = arith.constant 0 : index
    %58 = vector.load %arg1[%c7_43, %c0_44, %c0_45] : memref<9x4x128xf32, #tpu.memory_space<vmem>>, vector<1x4x128xf32>
    %59 = vector.shape_cast %58 : vector<1x4x128xf32> to vector<4x128xf32>
    %60 = arith.truncf %59 : vector<4x128xf32> to vector<4x128xbf16>
    %cst_46 = arith.constant dense<0.000000e+00> : vector<8x128xf32>
    %61 = tpu.matmul %57, %60, %cst_46 {dimension_numbers = #tpu.dot_dimension_numbers<[1], [0], [0], [1], [0, 0, 1, 1], [], []>} : vector<8x4xbf16>, vector<4x128xbf16>, vector<8x128xf32> -> vector<8x128xf32>
    %62 = arith.addf %54, %61 : vector<8x128xf32>
    %c8 = arith.constant 8 : index
    %c0_47 = arith.constant 0 : index
    %c0_48 = arith.constant 0 : index
    %63 = vector.load %arg2[%c8, %c0_47, %c0_48] : memref<9x8x4xf32, #tpu.memory_space<vmem>>, vector<1x8x4xf32>
    %64 = vector.shape_cast %63 : vector<1x8x4xf32> to vector<8x4xf32>
    %65 = arith.truncf %64 : vector<8x4xf32> to vector<8x4xbf16>
    %c8_49 = arith.constant 8 : index
    %c0_50 = arith.constant 0 : index
    %c0_51 = arith.constant 0 : index
    %66 = vector.load %arg1[%c8_49, %c0_50, %c0_51] : memref<9x4x128xf32, #tpu.memory_space<vmem>>, vector<1x4x128xf32>
    %67 = vector.shape_cast %66 : vector<1x4x128xf32> to vector<4x128xf32>
    %68 = arith.truncf %67 : vector<4x128xf32> to vector<4x128xbf16>
    %cst_52 = arith.constant dense<0.000000e+00> : vector<8x128xf32>
    %69 = tpu.matmul %65, %68, %cst_52 {dimension_numbers = #tpu.dot_dimension_numbers<[1], [0], [0], [1], [0, 0, 1, 1], [], []>} : vector<8x4xbf16>, vector<4x128xbf16>, vector<8x128xf32> -> vector<8x128xf32>
    %70 = arith.addf %62, %69 : vector<8x128xf32>
    %cst_53 = arith.constant dense<0.000000e+00> : vector<8xf32>
    %71 = vector.multi_reduction <add>, %70, %cst_53 [1] : vector<8x128xf32> to vector<8xf32>
    %72 = vector.shape_cast %71 : vector<8xf32> to vector<8x1xf32>
    %cst_54 = arith.constant 7.812500e-03 : f32
    %73 = vector.broadcast %cst_54 : f32 to vector<8x1xf32>
    %74 = arith.mulf %72, %73 : vector<8x1xf32>
    %75 = vector.broadcast %74 : vector<8x1xf32> to vector<8x128xf32>
    %76 = arith.subf %70, %75 : vector<8x128xf32>
    %77 = arith.mulf %76, %76 : vector<8x128xf32>
    %cst_55 = arith.constant dense<0.000000e+00> : vector<8xf32>
    %78 = vector.multi_reduction <add>, %77, %cst_55 [1] : vector<8x128xf32> to vector<8xf32>
    %79 = vector.shape_cast %78 : vector<8xf32> to vector<8x1xf32>
    %cst_56 = arith.constant 7.812500e-03 : f32
    %80 = vector.broadcast %cst_56 : f32 to vector<8x1xf32>
    %81 = arith.mulf %79, %80 : vector<8x1xf32>
    %cst_57 = arith.constant 1.000000e-03 : f32
    %82 = vector.broadcast %cst_57 : f32 to vector<8x1xf32>
    %83 = arith.addf %81, %82 : vector<8x1xf32>
    %84 = math.rsqrt %83 : vector<8x1xf32>
    %85 = vector.broadcast %84 : vector<8x1xf32> to vector<8x128xf32>
    %86 = arith.mulf %76, %85 : vector<8x128xf32>
    %cst_58 = arith.constant 0.000000e+00 : f32
    %87 = vector.broadcast %cst_58 : f32 to vector<8x128xf32>
    %88 = arith.maximumf %86, %87 : vector<8x128xf32>
    %c0_59 = arith.constant 0 : index
    %c0_60 = arith.constant 0 : index
    %89 = vector.load %arg3[%c0_59, %c0_60] : memref<8x128xf32, #tpu.memory_space<vmem>>, vector<8x128xf32>
    tpu.vector_store %arg3[%c0_59, %c0_60], %88 {strides = array<i32>} : memref<8x128xf32, #tpu.memory_space<vmem>>, vector<8x128xf32>,
    return
  }
  func.func @transform_0(%arg0: i32) -> (i32, i32, i32) {
    %c0_i32 = arith.constant 0 : i32
    %c0_i32_0 = arith.constant 0 : i32
    %c0_i32_1 = arith.constant 0 : i32
    %c0_i32_2 = arith.constant 0 : i32
    return %c0_i32, %c0_i32_0, %c0_i32_1 : i32, i32, i32
  }
  func.func @transform_1(%arg0: i32) -> (i32, i32, i32) {
    %c0_i32 = arith.constant 0 : i32
    %c0_i32_0 = arith.constant 0 : i32
    %c0_i32_1 = arith.constant 0 : i32
    %c0_i32_2 = arith.constant 0 : i32
    return %c0_i32, %c0_i32_0, %c0_i32_1 : i32, i32, i32
  }
  func.func @transform_2(%arg0: i32) -> (i32, i32) {
    %c0_i32 = arith.constant 0 : i32
    %c0_i32_0 = arith.constant 0 : i32
    %c0_i32_1 = arith.constant 0 : i32
    return %c0_i32, %c0_i32_0 : i32, i32
  }
}

module attributes {stable_mosaic.version = 11 : i64} {
  func.func @_fused_conv_bn_relu_kernel(%arg0: i32, %arg1: memref<1x8x128xf32, #tpu.memory_space<vmem>>, %arg2: memref<1x8x8xf32, #tpu.memory_space<vmem>>, %arg3: memref<8x128xf32, #tpu.memory_space<vmem>>) attributes {dimension_semantics = [#tpu.dimension_semantics<arbitrary>], iteration_bounds = array<i64: 1>, scalar_prefetch = 0 : i64, scratch_operands = 0 : i64, tpu.core_type = #tpu.core_type<tc>, window_params = [{pipeline_mode = #tpu.pipeline_mode<synchronous>, transform_indices = @transform_0, window_bounds = array<i64: 1, 8, 128>}, {pipeline_mode = #tpu.pipeline_mode<synchronous>, transform_indices = @transform_1, window_bounds = array<i64: 1, 8, 8>}, {pipeline_mode = #tpu.pipeline_mode<synchronous>, transform_indices = @transform_2, window_bounds = array<i64: 8, 128>}]} {
    %c0 = arith.constant 0 : index
    %c0_0 = arith.constant 0 : index
    %c0_1 = arith.constant 0 : index
    %0 = vector.load %arg2[%c0, %c0_0, %c0_1] : memref<1x8x8xf32, #tpu.memory_space<vmem>>, vector<1x8x8xf32>
    %1 = vector.shape_cast %0 : vector<1x8x8xf32> to vector<8x8xf32>
    %2 = arith.truncf %1 : vector<8x8xf32> to vector<8x8xbf16>
    %c0_2 = arith.constant 0 : index
    %c0_3 = arith.constant 0 : index
    %c0_4 = arith.constant 0 : index
    %3 = vector.load %arg1[%c0_2, %c0_3, %c0_4] : memref<1x8x128xf32, #tpu.memory_space<vmem>>, vector<1x8x128xf32>
    %4 = vector.shape_cast %3 : vector<1x8x128xf32> to vector<8x128xf32>
    %5 = arith.truncf %4 : vector<8x128xf32> to vector<8x128xbf16>
    %cst = arith.constant dense<0.000000e+00> : vector<8x128xf32>
    %6 = tpu.matmul %2, %5, %cst {dimension_numbers = #tpu.dot_dimension_numbers<[1], [0], [0], [1], [0, 0, 1, 1], [], []>} : vector<8x8xbf16>, vector<8x128xbf16>, vector<8x128xf32> -> vector<8x128xf32>
    %cst_5 = arith.constant dense<0.000000e+00> : vector<8xf32>
    %7 = vector.multi_reduction <add>, %6, %cst_5 [1] : vector<8x128xf32> to vector<8xf32>
    %8 = vector.shape_cast %7 : vector<8xf32> to vector<8x1xf32>
    %cst_6 = arith.constant 7.812500e-03 : f32
    %9 = vector.broadcast %cst_6 : f32 to vector<8x1xf32>
    %10 = arith.mulf %8, %9 : vector<8x1xf32>
    %11 = vector.broadcast %10 : vector<8x1xf32> to vector<8x128xf32>
    %12 = arith.subf %6, %11 : vector<8x128xf32>
    %13 = arith.mulf %12, %12 : vector<8x128xf32>
    %cst_7 = arith.constant dense<0.000000e+00> : vector<8xf32>
    %14 = vector.multi_reduction <add>, %13, %cst_7 [1] : vector<8x128xf32> to vector<8xf32>
    %15 = vector.shape_cast %14 : vector<8xf32> to vector<8x1xf32>
    %cst_8 = arith.constant 7.812500e-03 : f32
    %16 = vector.broadcast %cst_8 : f32 to vector<8x1xf32>
    %17 = arith.mulf %15, %16 : vector<8x1xf32>
    %cst_9 = arith.constant 1.000000e-03 : f32
    %18 = vector.broadcast %cst_9 : f32 to vector<8x1xf32>
    %19 = arith.addf %17, %18 : vector<8x1xf32>
    %20 = math.rsqrt %19 : vector<8x1xf32>
    %21 = vector.broadcast %20 : vector<8x1xf32> to vector<8x128xf32>
    %22 = arith.mulf %12, %21 : vector<8x128xf32>
    %cst_10 = arith.constant 0.000000e+00 : f32
    %23 = vector.broadcast %cst_10 : f32 to vector<8x128xf32>
    %24 = arith.maximumf %22, %23 : vector<8x128xf32>
    %c0_11 = arith.constant 0 : index
    %c0_12 = arith.constant 0 : index
    %25 = vector.load %arg3[%c0_11, %c0_12] : memref<8x128xf32, #tpu.memory_space<vmem>>, vector<8x128xf32>
    tpu.vector_store %arg3[%c0_11, %c0_12], %24 {strides = array<i32>} : memref<8x128xf32, #tpu.memory_space<vmem>>, vector<8x128xf32>,
    return
  }
  func.func @transform_0(%arg0: i32) -> (i32, i32, i32) {
    %c0_i32 = arith.constant 0 : i32
    %c0_i32_0 = arith.constant 0 : i32
    %c0_i32_1 = arith.constant 0 : i32
    %c0_i32_2 = arith.constant 0 : i32
    return %c0_i32, %c0_i32_0, %c0_i32_1 : i32, i32, i32
  }
  func.func @transform_1(%arg0: i32) -> (i32, i32, i32) {
    %c0_i32 = arith.constant 0 : i32
    %c0_i32_0 = arith.constant 0 : i32
    %c0_i32_1 = arith.constant 0 : i32
    %c0_i32_2 = arith.constant 0 : i32
    return %c0_i32, %c0_i32_0, %c0_i32_1 : i32, i32, i32
  }
  func.func @transform_2(%arg0: i32) -> (i32, i32) {
    %c0_i32 = arith.constant 0 : i32
    %c0_i32_0 = arith.constant 0 : i32
    %c0_i32_1 = arith.constant 0 : i32
    return %c0_i32, %c0_i32_0 : i32, i32
  }
}

module attributes {stable_mosaic.version = 11 : i64} {
  func.func @_fused_conv_bn_relu_kernel(%arg0: i32, %arg1: memref<9x8x32xf32, #tpu.memory_space<vmem>>, %arg2: memref<9x16x8xf32, #tpu.memory_space<vmem>>, %arg3: memref<16x32xf32, #tpu.memory_space<vmem>>) attributes {dimension_semantics = [#tpu.dimension_semantics<arbitrary>], iteration_bounds = array<i64: 1>, scalar_prefetch = 0 : i64, scratch_operands = 0 : i64, tpu.core_type = #tpu.core_type<tc>, window_params = [{pipeline_mode = #tpu.pipeline_mode<synchronous>, transform_indices = @transform_0, window_bounds = array<i64: 9, 8, 32>}, {pipeline_mode = #tpu.pipeline_mode<synchronous>, transform_indices = @transform_1, window_bounds = array<i64: 9, 16, 8>}, {pipeline_mode = #tpu.pipeline_mode<synchronous>, transform_indices = @transform_2, window_bounds = array<i64: 16, 32>}]} {
    %c0 = arith.constant 0 : index
    %c0_0 = arith.constant 0 : index
    %c0_1 = arith.constant 0 : index
    %0 = vector.load %arg2[%c0, %c0_0, %c0_1] : memref<9x16x8xf32, #tpu.memory_space<vmem>>, vector<1x16x8xf32>
    %1 = vector.shape_cast %0 : vector<1x16x8xf32> to vector<16x8xf32>
    %2 = arith.truncf %1 : vector<16x8xf32> to vector<16x8xbf16>
    %c0_2 = arith.constant 0 : index
    %c0_3 = arith.constant 0 : index
    %c0_4 = arith.constant 0 : index
    %3 = vector.load %arg1[%c0_2, %c0_3, %c0_4] : memref<9x8x32xf32, #tpu.memory_space<vmem>>, vector<1x8x32xf32>
    %4 = vector.shape_cast %3 : vector<1x8x32xf32> to vector<8x32xf32>
    %5 = arith.truncf %4 : vector<8x32xf32> to vector<8x32xbf16>
    %cst = arith.constant dense<0.000000e+00> : vector<16x32xf32>
    %6 = tpu.matmul %2, %5, %cst {dimension_numbers = #tpu.dot_dimension_numbers<[1], [0], [0], [1], [0, 0, 1, 1], [], []>} : vector<16x8xbf16>, vector<8x32xbf16>, vector<16x32xf32> -> vector<16x32xf32>
    %c1 = arith.constant 1 : index
    %c0_5 = arith.constant 0 : index
    %c0_6 = arith.constant 0 : index
    %7 = vector.load %arg2[%c1, %c0_5, %c0_6] : memref<9x16x8xf32, #tpu.memory_space<vmem>>, vector<1x16x8xf32>
    %8 = vector.shape_cast %7 : vector<1x16x8xf32> to vector<16x8xf32>
    %9 = arith.truncf %8 : vector<16x8xf32> to vector<16x8xbf16>
    %c1_7 = arith.constant 1 : index
    %c0_8 = arith.constant 0 : index
    %c0_9 = arith.constant 0 : index
    %10 = vector.load %arg1[%c1_7, %c0_8, %c0_9] : memref<9x8x32xf32, #tpu.memory_space<vmem>>, vector<1x8x32xf32>
    %11 = vector.shape_cast %10 : vector<1x8x32xf32> to vector<8x32xf32>
    %12 = arith.truncf %11 : vector<8x32xf32> to vector<8x32xbf16>
    %cst_10 = arith.constant dense<0.000000e+00> : vector<16x32xf32>
    %13 = tpu.matmul %9, %12, %cst_10 {dimension_numbers = #tpu.dot_dimension_numbers<[1], [0], [0], [1], [0, 0, 1, 1], [], []>} : vector<16x8xbf16>, vector<8x32xbf16>, vector<16x32xf32> -> vector<16x32xf32>
    %14 = arith.addf %6, %13 : vector<16x32xf32>
    %c2 = arith.constant 2 : index
    %c0_11 = arith.constant 0 : index
    %c0_12 = arith.constant 0 : index
    %15 = vector.load %arg2[%c2, %c0_11, %c0_12] : memref<9x16x8xf32, #tpu.memory_space<vmem>>, vector<1x16x8xf32>
    %16 = vector.shape_cast %15 : vector<1x16x8xf32> to vector<16x8xf32>
    %17 = arith.truncf %16 : vector<16x8xf32> to vector<16x8xbf16>
    %c2_13 = arith.constant 2 : index
    %c0_14 = arith.constant 0 : index
    %c0_15 = arith.constant 0 : index
    %18 = vector.load %arg1[%c2_13, %c0_14, %c0_15] : memref<9x8x32xf32, #tpu.memory_space<vmem>>, vector<1x8x32xf32>
    %19 = vector.shape_cast %18 : vector<1x8x32xf32> to vector<8x32xf32>
    %20 = arith.truncf %19 : vector<8x32xf32> to vector<8x32xbf16>
    %cst_16 = arith.constant dense<0.000000e+00> : vector<16x32xf32>
    %21 = tpu.matmul %17, %20, %cst_16 {dimension_numbers = #tpu.dot_dimension_numbers<[1], [0], [0], [1], [0, 0, 1, 1], [], []>} : vector<16x8xbf16>, vector<8x32xbf16>, vector<16x32xf32> -> vector<16x32xf32>
    %22 = arith.addf %14, %21 : vector<16x32xf32>
    %c3 = arith.constant 3 : index
    %c0_17 = arith.constant 0 : index
    %c0_18 = arith.constant 0 : index
    %23 = vector.load %arg2[%c3, %c0_17, %c0_18] : memref<9x16x8xf32, #tpu.memory_space<vmem>>, vector<1x16x8xf32>
    %24 = vector.shape_cast %23 : vector<1x16x8xf32> to vector<16x8xf32>
    %25 = arith.truncf %24 : vector<16x8xf32> to vector<16x8xbf16>
    %c3_19 = arith.constant 3 : index
    %c0_20 = arith.constant 0 : index
    %c0_21 = arith.constant 0 : index
    %26 = vector.load %arg1[%c3_19, %c0_20, %c0_21] : memref<9x8x32xf32, #tpu.memory_space<vmem>>, vector<1x8x32xf32>
    %27 = vector.shape_cast %26 : vector<1x8x32xf32> to vector<8x32xf32>
    %28 = arith.truncf %27 : vector<8x32xf32> to vector<8x32xbf16>
    %cst_22 = arith.constant dense<0.000000e+00> : vector<16x32xf32>
    %29 = tpu.matmul %25, %28, %cst_22 {dimension_numbers = #tpu.dot_dimension_numbers<[1], [0], [0], [1], [0, 0, 1, 1], [], []>} : vector<16x8xbf16>, vector<8x32xbf16>, vector<16x32xf32> -> vector<16x32xf32>
    %30 = arith.addf %22, %29 : vector<16x32xf32>
    %c4 = arith.constant 4 : index
    %c0_23 = arith.constant 0 : index
    %c0_24 = arith.constant 0 : index
    %31 = vector.load %arg2[%c4, %c0_23, %c0_24] : memref<9x16x8xf32, #tpu.memory_space<vmem>>, vector<1x16x8xf32>
    %32 = vector.shape_cast %31 : vector<1x16x8xf32> to vector<16x8xf32>
    %33 = arith.truncf %32 : vector<16x8xf32> to vector<16x8xbf16>
    %c4_25 = arith.constant 4 : index
    %c0_26 = arith.constant 0 : index
    %c0_27 = arith.constant 0 : index
    %34 = vector.load %arg1[%c4_25, %c0_26, %c0_27] : memref<9x8x32xf32, #tpu.memory_space<vmem>>, vector<1x8x32xf32>
    %35 = vector.shape_cast %34 : vector<1x8x32xf32> to vector<8x32xf32>
    %36 = arith.truncf %35 : vector<8x32xf32> to vector<8x32xbf16>
    %cst_28 = arith.constant dense<0.000000e+00> : vector<16x32xf32>
    %37 = tpu.matmul %33, %36, %cst_28 {dimension_numbers = #tpu.dot_dimension_numbers<[1], [0], [0], [1], [0, 0, 1, 1], [], []>} : vector<16x8xbf16>, vector<8x32xbf16>, vector<16x32xf32> -> vector<16x32xf32>
    %38 = arith.addf %30, %37 : vector<16x32xf32>
    %c5 = arith.constant 5 : index
    %c0_29 = arith.constant 0 : index
    %c0_30 = arith.constant 0 : index
    %39 = vector.load %arg2[%c5, %c0_29, %c0_30] : memref<9x16x8xf32, #tpu.memory_space<vmem>>, vector<1x16x8xf32>
    %40 = vector.shape_cast %39 : vector<1x16x8xf32> to vector<16x8xf32>
    %41 = arith.truncf %40 : vector<16x8xf32> to vector<16x8xbf16>
    %c5_31 = arith.constant 5 : index
    %c0_32 = arith.constant 0 : index
    %c0_33 = arith.constant 0 : index
    %42 = vector.load %arg1[%c5_31, %c0_32, %c0_33] : memref<9x8x32xf32, #tpu.memory_space<vmem>>, vector<1x8x32xf32>
    %43 = vector.shape_cast %42 : vector<1x8x32xf32> to vector<8x32xf32>
    %44 = arith.truncf %43 : vector<8x32xf32> to vector<8x32xbf16>
    %cst_34 = arith.constant dense<0.000000e+00> : vector<16x32xf32>
    %45 = tpu.matmul %41, %44, %cst_34 {dimension_numbers = #tpu.dot_dimension_numbers<[1], [0], [0], [1], [0, 0, 1, 1], [], []>} : vector<16x8xbf16>, vector<8x32xbf16>, vector<16x32xf32> -> vector<16x32xf32>
    %46 = arith.addf %38, %45 : vector<16x32xf32>
    %c6 = arith.constant 6 : index
    %c0_35 = arith.constant 0 : index
    %c0_36 = arith.constant 0 : index
    %47 = vector.load %arg2[%c6, %c0_35, %c0_36] : memref<9x16x8xf32, #tpu.memory_space<vmem>>, vector<1x16x8xf32>
    %48 = vector.shape_cast %47 : vector<1x16x8xf32> to vector<16x8xf32>
    %49 = arith.truncf %48 : vector<16x8xf32> to vector<16x8xbf16>
    %c6_37 = arith.constant 6 : index
    %c0_38 = arith.constant 0 : index
    %c0_39 = arith.constant 0 : index
    %50 = vector.load %arg1[%c6_37, %c0_38, %c0_39] : memref<9x8x32xf32, #tpu.memory_space<vmem>>, vector<1x8x32xf32>
    %51 = vector.shape_cast %50 : vector<1x8x32xf32> to vector<8x32xf32>
    %52 = arith.truncf %51 : vector<8x32xf32> to vector<8x32xbf16>
    %cst_40 = arith.constant dense<0.000000e+00> : vector<16x32xf32>
    %53 = tpu.matmul %49, %52, %cst_40 {dimension_numbers = #tpu.dot_dimension_numbers<[1], [0], [0], [1], [0, 0, 1, 1], [], []>} : vector<16x8xbf16>, vector<8x32xbf16>, vector<16x32xf32> -> vector<16x32xf32>
    %54 = arith.addf %46, %53 : vector<16x32xf32>
    %c7 = arith.constant 7 : index
    %c0_41 = arith.constant 0 : index
    %c0_42 = arith.constant 0 : index
    %55 = vector.load %arg2[%c7, %c0_41, %c0_42] : memref<9x16x8xf32, #tpu.memory_space<vmem>>, vector<1x16x8xf32>
    %56 = vector.shape_cast %55 : vector<1x16x8xf32> to vector<16x8xf32>
    %57 = arith.truncf %56 : vector<16x8xf32> to vector<16x8xbf16>
    %c7_43 = arith.constant 7 : index
    %c0_44 = arith.constant 0 : index
    %c0_45 = arith.constant 0 : index
    %58 = vector.load %arg1[%c7_43, %c0_44, %c0_45] : memref<9x8x32xf32, #tpu.memory_space<vmem>>, vector<1x8x32xf32>
    %59 = vector.shape_cast %58 : vector<1x8x32xf32> to vector<8x32xf32>
    %60 = arith.truncf %59 : vector<8x32xf32> to vector<8x32xbf16>
    %cst_46 = arith.constant dense<0.000000e+00> : vector<16x32xf32>
    %61 = tpu.matmul %57, %60, %cst_46 {dimension_numbers = #tpu.dot_dimension_numbers<[1], [0], [0], [1], [0, 0, 1, 1], [], []>} : vector<16x8xbf16>, vector<8x32xbf16>, vector<16x32xf32> -> vector<16x32xf32>
    %62 = arith.addf %54, %61 : vector<16x32xf32>
    %c8 = arith.constant 8 : index
    %c0_47 = arith.constant 0 : index
    %c0_48 = arith.constant 0 : index
    %63 = vector.load %arg2[%c8, %c0_47, %c0_48] : memref<9x16x8xf32, #tpu.memory_space<vmem>>, vector<1x16x8xf32>
    %64 = vector.shape_cast %63 : vector<1x16x8xf32> to vector<16x8xf32>
    %65 = arith.truncf %64 : vector<16x8xf32> to vector<16x8xbf16>
    %c8_49 = arith.constant 8 : index
    %c0_50 = arith.constant 0 : index
    %c0_51 = arith.constant 0 : index
    %66 = vector.load %arg1[%c8_49, %c0_50, %c0_51] : memref<9x8x32xf32, #tpu.memory_space<vmem>>, vector<1x8x32xf32>
    %67 = vector.shape_cast %66 : vector<1x8x32xf32> to vector<8x32xf32>
    %68 = arith.truncf %67 : vector<8x32xf32> to vector<8x32xbf16>
    %cst_52 = arith.constant dense<0.000000e+00> : vector<16x32xf32>
    %69 = tpu.matmul %65, %68, %cst_52 {dimension_numbers = #tpu.dot_dimension_numbers<[1], [0], [0], [1], [0, 0, 1, 1], [], []>} : vector<16x8xbf16>, vector<8x32xbf16>, vector<16x32xf32> -> vector<16x32xf32>
    %70 = arith.addf %62, %69 : vector<16x32xf32>
    %cst_53 = arith.constant dense<0.000000e+00> : vector<16xf32>
    %71 = vector.multi_reduction <add>, %70, %cst_53 [1] : vector<16x32xf32> to vector<16xf32>
    %72 = vector.shape_cast %71 : vector<16xf32> to vector<16x1xf32>
    %cst_54 = arith.constant 3.125000e-02 : f32
    %73 = vector.broadcast %cst_54 : f32 to vector<16x1xf32>
    %74 = arith.mulf %72, %73 : vector<16x1xf32>
    %75 = vector.broadcast %74 : vector<16x1xf32> to vector<16x32xf32>
    %76 = arith.subf %70, %75 : vector<16x32xf32>
    %77 = arith.mulf %76, %76 : vector<16x32xf32>
    %cst_55 = arith.constant dense<0.000000e+00> : vector<16xf32>
    %78 = vector.multi_reduction <add>, %77, %cst_55 [1] : vector<16x32xf32> to vector<16xf32>
    %79 = vector.shape_cast %78 : vector<16xf32> to vector<16x1xf32>
    %cst_56 = arith.constant 3.125000e-02 : f32
    %80 = vector.broadcast %cst_56 : f32 to vector<16x1xf32>
    %81 = arith.mulf %79, %80 : vector<16x1xf32>
    %cst_57 = arith.constant 1.000000e-03 : f32
    %82 = vector.broadcast %cst_57 : f32 to vector<16x1xf32>
    %83 = arith.addf %81, %82 : vector<16x1xf32>
    %84 = math.rsqrt %83 : vector<16x1xf32>
    %85 = vector.broadcast %84 : vector<16x1xf32> to vector<16x32xf32>
    %86 = arith.mulf %76, %85 : vector<16x32xf32>
    %cst_58 = arith.constant 0.000000e+00 : f32
    %87 = vector.broadcast %cst_58 : f32 to vector<16x32xf32>
    %88 = arith.maximumf %86, %87 : vector<16x32xf32>
    %c0_59 = arith.constant 0 : index
    %c0_60 = arith.constant 0 : index
    %89 = vector.load %arg3[%c0_59, %c0_60] : memref<16x32xf32, #tpu.memory_space<vmem>>, vector<16x32xf32>
    tpu.vector_store %arg3[%c0_59, %c0_60], %88 {strides = array<i32>} : memref<16x32xf32, #tpu.memory_space<vmem>>, vector<16x32xf32>,
    return
  }
  func.func @transform_0(%arg0: i32) -> (i32, i32, i32) {
    %c0_i32 = arith.constant 0 : i32
    %c0_i32_0 = arith.constant 0 : i32
    %c0_i32_1 = arith.constant 0 : i32
    %c0_i32_2 = arith.constant 0 : i32
    return %c0_i32, %c0_i32_0, %c0_i32_1 : i32, i32, i32
  }
  func.func @transform_1(%arg0: i32) -> (i32, i32, i32) {
    %c0_i32 = arith.constant 0 : i32
    %c0_i32_0 = arith.constant 0 : i32
    %c0_i32_1 = arith.constant 0 : i32
    %c0_i32_2 = arith.constant 0 : i32
    return %c0_i32, %c0_i32_0, %c0_i32_1 : i32, i32, i32
  }
  func.func @transform_2(%arg0: i32) -> (i32, i32) {
    %c0_i32 = arith.constant 0 : i32
    %c0_i32_0 = arith.constant 0 : i32
    %c0_i32_1 = arith.constant 0 : i32
    return %c0_i32, %c0_i32_0 : i32, i32
  }
}

</mosaic_0001>

<llo_original>
// kernel: downsample_forward.4
$region0: #{downsample_forward.4}
  #allocation0 [shape = 'u32[]', space=smem, size = 0x4, offset = 0x4, fixed_abs, tag = 'smem constant byte address 0x4 - core index']
  #allocation1 [shape = 'u32[144,128]{1,0:T(1,128)}', space=vmem, size = 0x12000, scoped, tag = 'internal scratch']
  %s0 = inlined_call_operand.vmem [shape: f32[1,4,512], index: 0, kind: input, shape index: {}]
  %s1 = inlined_call_operand.vmem [shape: f32[1,4,4], index: 1, kind: input, shape index: {}]
  %s2 = inlined_call_operand.vmem [shape: f32[4,512], index: 2, kind: output, shape index: {}]
  %s3 = sld [smem:[#allocation0]]
  $region18: #{downsample_forward.4} parent=0
    _
  %s5 = ssub.s32 1, %s3
  %s6 = scalar_select 0, %s5, %s3
  // Predicated region
  $region2: #{downsample_forward.4} parent=0 // pred_check
    _
  $region3: #{downsample_forward.4} parent=0 // pred_check_branch
    %8 = sbr.rel (0) target = $region5
  $region4: #{downsample_forward.4} parent=0 // pred_region
    _
  $region5: #{downsample_forward.4} parent=0 // pred_fallthru
    _
  // Predicated region
  $region6: #{downsample_forward.4} parent=0 // pred_check
    _
  $region7: #{downsample_forward.4} parent=0 // pred_check_branch
    %10 = sbr.rel (0) target = $region9
  $region8: #{downsample_forward.4} parent=0 // pred_region
    _
  $region9: #{downsample_forward.4} parent=0 // pred_fallthru
    _
  %v12 = vld [vmem:[%s1] sm:$0xf]
  %v13 = vpack.c.bf16 %v12, %v12
  %v14 = vld [vmem:[%s0] sm:$0xff]
  %v15 = vld [vmem:[%s0 + $0x8] sm:$0xff]
  %v18 = vcombine.high %v14, %v14
  %v19 = vcombine.high %v15, %v15
  %v22 = vpack.c.bf16 %v14, %v14
  %v23 = vpack.c.bf16 %v18, %v18
  %v24 = vpack.c.bf16 %v15, %v15
  %v25 = vpack.c.bf16 %v19, %v19
  %vm26 = vcmask 31744
  %v28 = vsel %vm26, %v13, 0
  %vm30 = vcmask 1041408
  %v32 = vsel %vm30, %v22, 0
  %v35 = vsel %vm30, %v23, 0
  %v38 = vsel %vm30, %v24, 0
  %v41 = vsel %vm30, %v25, 0
  %43 = vmatprep.subr.bf16.mxu0 0
  %44 = vmatpush1.bf16.msra.mxu0 0
  %45 = vmatprep.subr.bf16.mxu0 0
  %46 = vmatpush1.bf16.msra.mxu0 0
  %47 = vmatprep.subr.bf16.mxu0 0
  %48 = vmatpush1.bf16.msra.mxu0 0
  %49 = vmatprep.subr.bf16.mxu0 0
  %50 = vmatpush1.bf16.msra.mxu0 0
  %51 = vmatprep.subr.bf16.mxu0 0
  %52 = vmatpush1.bf16.msra.mxu0 0
  %53 = vmatprep.subr.bf16.mxu0 0
  %54 = vmatpush1.bf16.msra.mxu0 0
  %55 = vmatprep.subr.bf16.mxu0 0
  %56 = vmatpush1.bf16.msra.mxu0 0
  %57 = vmatprep.subr.bf16.mxu0 %v35
  %58 = vmatpush1.bf16.msra.mxu0 %v32
  %59 = vmatprep.subr.bf16.mxu0 0
  %60 = vmatpush2.bf16.msra.mxu0 0
  %61 = vmatprep.subr.bf16.mxu0 0
  %62 = vmatpush2.bf16.msra.mxu0 0
  %63 = vmatprep.subr.bf16.mxu0 0
  %64 = vmatpush2.bf16.msra.mxu0 0
  %65 = vmatprep.subr.bf16.mxu0 0
  %66 = vmatpush2.bf16.msra.mxu0 0
  %67 = vmatprep.subr.bf16.mxu0 0
  %68 = vmatpush2.bf16.msra.mxu0 0
  %69 = vmatprep.subr.bf16.mxu0 0
  %70 = vmatpush2.bf16.msra.mxu0 0
  %71 = vmatprep.subr.bf16.mxu0 0
  %72 = vmatpush2.bf16.msra.mxu0 0
  %73 = vmatprep.subr.bf16.mxu0 0
  %74 = vmatpush2.bf16.msra.mxu0 0
  %75 = vmatprep.mubr.bf16.mxu0 0
  %76 = vmatmul.mubr.bf16.gmra.mxu0 %v28
  %v77 = vpop.f32.mrf.mxu0
  %v78 = vadd.f32 0.0, %v77
  %v79 = vpop.f32.mrf.mxu0
  %v80 = vadd.f32 0.0, %v79
  %v81 = vpop.f32.mrf.mxu0
  %v82 = vpop.f32.mrf.mxu0
  %83 = vdwg.mxu0
  %84 = vmatprep.subr.bf16.mxu0 0
  %85 = vmatpush1.bf16.msra.mxu0 0
  %86 = vmatprep.subr.bf16.mxu0 0
  %87 = vmatpush1.bf16.msra.mxu0 0
  %88 = vmatprep.subr.bf16.mxu0 0
  %89 = vmatpush1.bf16.msra.mxu0 0
  %90 = vmatprep.subr.bf16.mxu0 0
  %91 = vmatpush1.bf16.msra.mxu0 0
  %92 = vmatprep.subr.bf16.mxu0 0
  %93 = vmatpush1.bf16.msra.mxu0 0
  %94 = vmatprep.subr.bf16.mxu0 0
  %95 = vmatpush1.bf16.msra.mxu0 0
  %96 = vmatprep.subr.bf16.mxu0 0
  %97 = vmatpush1.bf16.msra.mxu0 0
  %98 = vmatprep.subr.bf16.mxu0 %v41
  %99 = vmatpush1.bf16.msra.mxu0 %v38
  %100 = vmatprep.subr.bf16.mxu0 0
  %101 = vmatpush2.bf16.msra.mxu0 0
  %102 = vmatprep.subr.bf16.mxu0 0
  %103 = vmatpush2.bf16.msra.mxu0 0
  %104 = vmatprep.subr.bf16.mxu0 0
  %105 = vmatpush2.bf16.msra.mxu0 0
  %106 = vmatprep.subr.bf16.mxu0 0
  %107 = vmatpush2.bf16.msra.mxu0 0
  %108 = vmatprep.subr.bf16.mxu0 0
  %109 = vmatpush2.bf16.msra.mxu0 0
  %110 = vmatprep.subr.bf16.mxu0 0
  %111 = vmatpush2.bf16.msra.mxu0 0
  %112 = vmatprep.subr.bf16.mxu0 0
  %113 = vmatpush2.bf16.msra.mxu0 0
  %114 = vmatprep.subr.bf16.mxu0 0
  %115 = vmatpush2.bf16.msra.mxu0 0
  %116 = vmatprep.mubr.bf16.mxu0 0
  %117 = vmatmul.mubr.bf16.gmra.mxu0 %v28
  %v118 = vpop.f32.mrf.mxu0
  %v119 = vadd.f32 0.0, %v118
  %v120 = vpop.f32.mrf.mxu0
  %v121 = vadd.f32 0.0, %v120
  %v122 = vpop.f32.mrf.mxu0
  %v123 = vpop.f32.mrf.mxu0
  %124 = vdwg.mxu0
  %vm125 = vcmask 1043456
  %v126 = vsel %vm125, %v78, 0.0
  %v127 = vsel %vm125, %v80, 0.0
  %v128 = vadd.f32 %v126, %v127
  %v129 = vsel %vm125, %v119, 0.0
  %v130 = vadd.f32 %v128, %v129
  %v131 = vsel %vm125, %v121, 0.0
  %v132 = vadd.f32 %v130, %v131
  %133 = vadd.xlane.f32.xlu0 %v132
  %v134 = vpop.xlane.xlu0 %133
  %v135 = vmul.f32 %v134, 0.001953125
  %v136 = vsub.f32 %v78, %v135
  %v137 = vsub.f32 %v80, %v135
  %v138 = vsub.f32 %v119, %v135
  %v139 = vsub.f32 %v121, %v135
  %v140 = vmul.f32 %v136, %v136
  %v141 = vmul.f32 %v137, %v137
  %v142 = vmul.f32 %v138, %v138
  %v143 = vmul.f32 %v139, %v139
  %v144 = vsel %vm125, %v140, 0.0
  %v145 = vsel %vm125, %v141, 0.0
  %v146 = vadd.f32 %v144, %v145
  %v147 = vsel %vm125, %v142, 0.0
  %v148 = vadd.f32 %v146, %v147
  %v149 = vsel %vm125, %v143, 0.0
  %v150 = vadd.f32 %v148, %v149
  %151 = vadd.xlane.f32.xlu0 %v150
  %v152 = vpop.xlane.xlu0 %151
  %v153 = vmul.f32 %v152, 0.001953125
  %v154 = vadd.f32 %v153, 0.001
  %v155 = vrsqrt.pop %v154
  %v156 = vmul.f32 %v136, %v155
  %v157 = vmul.f32 %v137, %v155
  %v158 = vmul.f32 %v138, %v155
  %v159 = vmul.f32 %v139, %v155
  %v160 = vmax.f32 %v156, 0.0
  %v161 = vmax.f32 %v157, 0.0
  %v162 = vmax.f32 %v158, 0.0
  %v163 = vmax.f32 %v159, 0.0
  %v168 = vcombine.low %v160, %v161
  %v169 = vcombine.low %v162, %v163
  %172 = vst [vmem:[%s2] sm:$0xff] %v168
  %173 = vst [vmem:[%s2 + $0x8] sm:$0xff] %v169
  // Predicated region
  $region10: #{downsample_forward.4} parent=0 // pred_check
    _
  $region11: #{downsample_forward.4} parent=0 // pred_check_branch
    %175 = sbr.rel (0) target = $region13
  $region12: #{downsample_forward.4} parent=0 // pred_region
    _
  $region13: #{downsample_forward.4} parent=0 // pred_fallthru
    _
  // Predicated region
  $region14: #{downsample_forward.4} parent=0 // pred_check
    _
  $region15: #{downsample_forward.4} parent=0 // pred_check_branch
    %177 = sbr.rel (0) target = $region17
  $region16: #{downsample_forward.4} parent=0 // pred_region
    _
  $region17: #{downsample_forward.4} parent=0 // pred_fallthru
    _

// kernel: downsample_forward.6
$region0: #{downsample_forward.6}
  #allocation0 [shape = 'u32[]', space=smem, size = 0x4, offset = 0x4, fixed_abs, tag = 'smem constant byte address 0x4 - core index']
  #allocation1 [shape = 'u32[144,128]{1,0:T(1,128)}', space=vmem, size = 0x12000, scoped, tag = 'internal scratch']
  %s0 = inlined_call_operand.vmem [shape: f32[1,8,128], index: 0, kind: input, shape index: {}]
  %s1 = inlined_call_operand.vmem [shape: f32[1,8,8], index: 1, kind: input, shape index: {}]
  %s2 = inlined_call_operand.vmem [shape: f32[8,128], index: 2, kind: output, shape index: {}]
  %s3 = sld [smem:[#allocation0]]
  $region18: #{downsample_forward.6} parent=0
    _
  %s5 = ssub.s32 1, %s3
  %s6 = scalar_select 0, %s5, %s3
  // Predicated region
  $region2: #{downsample_forward.6} parent=0 // pred_check
    _
  $region3: #{downsample_forward.6} parent=0 // pred_check_branch
    %8 = sbr.rel (0) target = $region5
  $region4: #{downsample_forward.6} parent=0 // pred_region
    _
  $region5: #{downsample_forward.6} parent=0 // pred_fallthru
    _
  // Predicated region
  $region6: #{downsample_forward.6} parent=0 // pred_check
    _
  $region7: #{downsample_forward.6} parent=0 // pred_check_branch
    %10 = sbr.rel (0) target = $region9
  $region8: #{downsample_forward.6} parent=0 // pred_region
    _
  $region9: #{downsample_forward.6} parent=0 // pred_fallthru
    _
  %v12 = vld [vmem:[%s1] sm:$0xff]
  %v13 = vpack.c.bf16 %v12, %v12
  %v14 = vld [vmem:[%s0] sm:$0xff]
  %v15 = vpack.c.bf16 %v14, %v14
  %vm16 = vcmask 64512
  %v18 = vsel %vm16, %v13, 0
  %vm20 = vcmask 1043456
  %v22 = vsel %vm20, %v15, 0
  %24 = vmatprep.subr.bf16.mxu0 0
  %25 = vmatpush1.bf16.msra.mxu0 0
  %26 = vmatprep.subr.bf16.mxu0 0
  %27 = vmatpush1.bf16.msra.mxu0 0
  %28 = vmatprep.subr.bf16.mxu0 0
  %29 = vmatpush1.bf16.msra.mxu0 0
  %30 = vmatprep.subr.bf16.mxu0 0
  %31 = vmatpush1.bf16.msra.mxu0 0
  %32 = vmatprep.subr.bf16.mxu0 0
  %33 = vmatpush1.bf16.msra.mxu0 0
  %34 = vmatprep.subr.bf16.mxu0 0
  %35 = vmatpush1.bf16.msra.mxu0 0
  %36 = vmatprep.subr.bf16.mxu0 0
  %37 = vmatpush1.bf16.msra.mxu0 0
  %38 = vmatprep.subr.bf16.mxu0 0
  %39 = vmatpush1.bf16.msra.mxu0 %v22
  %40 = vmatprep.subr.bf16.mxu0 0
  %41 = vmatpush2.bf16.msra.mxu0 0
  %42 = vmatprep.subr.bf16.mxu0 0
  %43 = vmatpush2.bf16.msra.mxu0 0
  %44 = vmatprep.subr.bf16.mxu0 0
  %45 = vmatpush2.bf16.msra.mxu0 0
  %46 = vmatprep.subr.bf16.mxu0 0
  %47 = vmatpush2.bf16.msra.mxu0 0
  %48 = vmatprep.subr.bf16.mxu0 0
  %49 = vmatpush2.bf16.msra.mxu0 0
  %50 = vmatprep.subr.bf16.mxu0 0
  %51 = vmatpush2.bf16.msra.mxu0 0
  %52 = vmatprep.subr.bf16.mxu0 0
  %53 = vmatpush2.bf16.msra.mxu0 0
  %54 = vmatprep.subr.bf16.mxu0 0
  %55 = vmatpush2.bf16.msra.mxu0 0
  %56 = vmatprep.mubr.bf16.mxu0 0
  %57 = vmatmul.mubr.bf16.gmra.mxu0 %v18
  %v58 = vpop.f32.mrf.mxu0
  %v59 = vadd.f32 0.0, %v58
  %v60 = vpop.f32.mrf.mxu0
  %v61 = vpop.f32.mrf.mxu0
  %v62 = vpop.f32.mrf.mxu0
  %63 = vdwg.mxu0
  %64 = vadd.xlane.f32.xlu0 %v59
  %v65 = vpop.xlane.xlu0 %64
  %v66 = vmul.f32 %v65, 0.0078125
  %v67 = vsub.f32 %v59, %v66
  %v68 = vmul.f32 %v67, %v67
  %69 = vadd.xlane.f32.xlu0 %v68
  %v70 = vpop.xlane.xlu0 %69
  %v71 = vmul.f32 %v70, 0.0078125
  %v72 = vadd.f32 %v71, 0.001
  %v73 = vrsqrt.pop %v72
  %v74 = vmul.f32 %v67, %v73
  %v75 = vmax.f32 %v74, 0.0
  %76 = vst [vmem:[%s2] sm:$0xff] %v75
  // Predicated region
  $region10: #{downsample_forward.6} parent=0 // pred_check
    _
  $region11: #{downsample_forward.6} parent=0 // pred_check_branch
    %78 = sbr.rel (0) target = $region13
  $region12: #{downsample_forward.6} parent=0 // pred_region
    _
  $region13: #{downsample_forward.6} parent=0 // pred_fallthru
    _
  // Predicated region
  $region14: #{downsample_forward.6} parent=0 // pred_check
    _
  $region15: #{downsample_forward.6} parent=0 // pred_check_branch
    %80 = sbr.rel (0) target = $region17
  $region16: #{downsample_forward.6} parent=0 // pred_region
    _
  $region17: #{downsample_forward.6} parent=0 // pred_fallthru
    _

// kernel: downsample_forward.5
$region0: #{downsample_forward.5}
  #allocation0 [shape = 'u32[]', space=smem, size = 0x4, offset = 0x4, fixed_abs, tag = 'smem constant byte address 0x4 - core index']
  #allocation1 [shape = 'u32[144,128]{1,0:T(1,128)}', space=vmem, size = 0x12000, scoped, tag = 'internal scratch']
  %s0 = inlined_call_operand.vmem [shape: f32[9,4,128], index: 0, kind: input, shape index: {}]
  %s1 = inlined_call_operand.vmem [shape: f32[9,8,4], index: 1, kind: input, shape index: {}]
  %s2 = inlined_call_operand.vmem [shape: f32[8,128], index: 2, kind: output, shape index: {}]
  %s3 = sld [smem:[#allocation0]]
  $region18: #{downsample_forward.5} parent=0
    _
  %s5 = ssub.s32 1, %s3
  %s6 = scalar_select 0, %s5, %s3
  // Predicated region
  $region2: #{downsample_forward.5} parent=0 // pred_check
    _
  $region3: #{downsample_forward.5} parent=0 // pred_check_branch
    %8 = sbr.rel (0) target = $region5
  $region4: #{downsample_forward.5} parent=0 // pred_region
    _
  $region5: #{downsample_forward.5} parent=0 // pred_fallthru
    _
  // Predicated region
  $region6: #{downsample_forward.5} parent=0 // pred_check
    _
  $region7: #{downsample_forward.5} parent=0 // pred_check_branch
    %10 = sbr.rel (0) target = $region9
  $region8: #{downsample_forward.5} parent=0 // pred_region
    _
  $region9: #{downsample_forward.5} parent=0 // pred_fallthru
    _
  %v12 = vld [vmem:[%s1] sm:$0xff]
  %v13 = vpack.c.bf16 %v12, %v12
  %v14 = vld [vmem:[%s0] sm:$0xf]
  %v15 = vpack.c.bf16 %v14, %v14
  %s16 = scalar_lea.vmem %s1, 8
  %v17 = vld [vmem:[%s16] sm:$0xff]
  %v18 = vpack.c.bf16 %v17, %v17
  %s19 = scalar_lea.vmem %s0, 4
  %v20 = vld [vmem:[%s19] sm:$0xf]
  %v21 = vpack.c.bf16 %v20, %v20
  %vm22 = vcmask 31744
  %v24 = vsel %vm22, %v18, 0
  %vm26 = vcmask 1041408
  %v28 = vsel %vm26, %v21, 0
  %30 = vmatprep.subr.bf16.mxu0 0
  %31 = vmatpush1.bf16.msra.mxu0 0
  %32 = vmatprep.subr.bf16.mxu0 0
  %33 = vmatpush1.bf16.msra.mxu0 0
  %34 = vmatprep.subr.bf16.mxu0 0
  %35 = vmatpush1.bf16.msra.mxu0 0
  %36 = vmatprep.subr.bf16.mxu0 0
  %37 = vmatpush1.bf16.msra.mxu0 0
  %38 = vmatprep.subr.bf16.mxu0 0
  %39 = vmatpush1.bf16.msra.mxu0 0
  %40 = vmatprep.subr.bf16.mxu0 0
  %41 = vmatpush1.bf16.msra.mxu0 0
  %42 = vmatprep.subr.bf16.mxu0 0
  %43 = vmatpush1.bf16.msra.mxu0 0
  %44 = vmatprep.subr.bf16.mxu0 0
  %45 = vmatpush1.bf16.msra.mxu0 %v28
  %46 = vmatprep.subr.bf16.mxu0 0
  %47 = vmatpush2.bf16.msra.mxu0 0
  %48 = vmatprep.subr.bf16.mxu0 0
  %49 = vmatpush2.bf16.msra.mxu0 0
  %50 = vmatprep.subr.bf16.mxu0 0
  %51 = vmatpush2.bf16.msra.mxu0 0
  %52 = vmatprep.subr.bf16.mxu0 0
  %53 = vmatpush2.bf16.msra.mxu0 0
  %54 = vmatprep.subr.bf16.mxu0 0
  %55 = vmatpush2.bf16.msra.mxu0 0
  %56 = vmatprep.subr.bf16.mxu0 0
  %57 = vmatpush2.bf16.msra.mxu0 0
  %58 = vmatprep.subr.bf16.mxu0 0
  %59 = vmatpush2.bf16.msra.mxu0 0
  %60 = vmatprep.subr.bf16.mxu0 0
  %61 = vmatpush2.bf16.msra.mxu0 0
  %62 = vmatprep.mubr.bf16.mxu0 0
  %63 = vmatmul.mubr.bf16.gmra.mxu0 %v24
  %v64 = vpop.f32.mrf.mxu0
  %v65 = vadd.f32 0.0, %v64
  %v66 = vpop.f32.mrf.mxu0
  %v67 = vpop.f32.mrf.mxu0
  %v68 = vpop.f32.mrf.mxu0
  %69 = vdwg.mxu0
  %v71 = vsel %vm22, %v13, 0
  %v74 = vsel %vm26, %v15, 0
  %76 = vmatprep.subr.bf16.mxu0 0
  %77 = vmatpush1.bf16.msra.mxu0 0
  %78 = vmatprep.subr.bf16.mxu0 0
  %79 = vmatpush1.bf16.msra.mxu0 0
  %80 = vmatprep.subr.bf16.mxu0 0
  %81 = vmatpush1.bf16.msra.mxu0 0
  %82 = vmatprep.subr.bf16.mxu0 0
  %83 = vmatpush1.bf16.msra.mxu0 0
  %84 = vmatprep.subr.bf16.mxu0 0
  %85 = vmatpush1.bf16.msra.mxu0 0
  %86 = vmatprep.subr.bf16.mxu0 0
  %87 = vmatpush1.bf16.msra.mxu0 0
  %88 = vmatprep.subr.bf16.mxu0 0
  %89 = vmatpush1.bf16.msra.mxu0 0
  %90 = vmatprep.subr.bf16.mxu0 0
  %91 = vmatpush1.bf16.msra.mxu0 %v74
  %92 = vmatprep.subr.bf16.mxu0 0
  %93 = vmatpush2.bf16.msra.mxu0 0
  %94 = vmatprep.subr.bf16.mxu0 0
  %95 = vmatpush2.bf16.msra.mxu0 0
  %96 = vmatprep.subr.bf16.mxu0 0
  %97 = vmatpush2.bf16.msra.mxu0 0
  %98 = vmatprep.subr.bf16.mxu0 0
  %99 = vmatpush2.bf16.msra.mxu0 0
  %100 = vmatprep.subr.bf16.mxu0 0
  %101 = vmatpush2.bf16.msra.mxu0 0
  %102 = vmatprep.subr.bf16.mxu0 0
  %103 = vmatpush2.bf16.msra.mxu0 0
  %104 = vmatprep.subr.bf16.mxu0 0
  %105 = vmatpush2.bf16.msra.mxu0 0
  %106 = vmatprep.subr.bf16.mxu0 0
  %107 = vmatpush2.bf16.msra.mxu0 0
  %108 = vmatprep.mubr.bf16.mxu0 0
  %109 = vmatmul.mubr.bf16.gmra.mxu0 %v71
  %v110 = vpop.f32.mrf.mxu0
  %v111 = vadd.f32 %v65, %v110
  %v112 = vpop.f32.mrf.mxu0
  %v113 = vpop.f32.mrf.mxu0
  %v114 = vpop.f32.mrf.mxu0
  %115 = vdwg.mxu0
  %s116 = scalar_lea.vmem %s1, 16
  %v117 = vld [vmem:[%s116] sm:$0xff]
  %v118 = vpack.c.bf16 %v117, %v117
  %s119 = scalar_lea.vmem %s0, 8
  %v120 = vld [vmem:[%s119] sm:$0xf]
  %v121 = vpack.c.bf16 %v120, %v120
  %v123 = vsel %vm22, %v118, 0
  %v126 = vsel %vm26, %v121, 0
  %128 = vmatprep.subr.bf16.mxu0 0
  %129 = vmatpush1.bf16.msra.mxu0 0
  %130 = vmatprep.subr.bf16.mxu0 0
  %131 = vmatpush1.bf16.msra.mxu0 0
  %132 = vmatprep.subr.bf16.mxu0 0
  %133 = vmatpush1.bf16.msra.mxu0 0
  %134 = vmatprep.subr.bf16.mxu0 0
  %135 = vmatpush1.bf16.msra.mxu0 0
  %136 = vmatprep.subr.bf16.mxu0 0
  %137 = vmatpush1.bf16.msra.mxu0 0
  %138 = vmatprep.subr.bf16.mxu0 0
  %139 = vmatpush1.bf16.msra.mxu0 0
  %140 = vmatprep.subr.bf16.mxu0 0
  %141 = vmatpush1.bf16.msra.mxu0 0
  %142 = vmatprep.subr.bf16.mxu0 0
  %143 = vmatpush1.bf16.msra.mxu0 %v126
  %144 = vmatprep.subr.bf16.mxu0 0
  %145 = vmatpush2.bf16.msra.mxu0 0
  %146 = vmatprep.subr.bf16.mxu0 0
  %147 = vmatpush2.bf16.msra.mxu0 0
  %148 = vmatprep.subr.bf16.mxu0 0
  %149 = vmatpush2.bf16.msra.mxu0 0
  %150 = vmatprep.subr.bf16.mxu0 0
  %151 = vmatpush2.bf16.msra.mxu0 0
  %152 = vmatprep.subr.bf16.mxu0 0
  %153 = vmatpush2.bf16.msra.mxu0 0
  %154 = vmatprep.subr.bf16.mxu0 0
  %155 = vmatpush2.bf16.msra.mxu0 0
  %156 = vmatprep.subr.bf16.mxu0 0
  %157 = vmatpush2.bf16.msra.mxu0 0
  %158 = vmatprep.subr.bf16.mxu0 0
  %159 = vmatpush2.bf16.msra.mxu0 0
  %160 = vmatprep.mubr.bf16.mxu0 0
  %161 = vmatmul.mubr.bf16.gmra.mxu0 %v123
  %v162 = vpop.f32.mrf.mxu0
  %v163 = vadd.f32 0.0, %v162
  %v164 = vpop.f32.mrf.mxu0
  %v165 = vpop.f32.mrf.mxu0
  %v166 = vpop.f32.mrf.mxu0
  %167 = vdwg.mxu0
  %v168 = vadd.f32 %v111, %v163
  %s169 = scalar_lea.vmem %s1, 24
  %v170 = vld [vmem:[%s169] sm:$0xff]
  %v171 = vpack.c.bf16 %v170, %v170
  %s172 = scalar_lea.vmem %s0, 12
  %v173 = vld [vmem:[%s172] sm:$0xf]
  %v174 = vpack.c.bf16 %v173, %v173
  %v176 = vsel %vm22, %v171, 0
  %v179 = vsel %vm26, %v174, 0
  %181 = vmatprep.subr.bf16.mxu0 0
  %182 = vmatpush1.bf16.msra.mxu0 0
  %183 = vmatprep.subr.bf16.mxu0 0
  %184 = vmatpush1.bf16.msra.mxu0 0
  %185 = vmatprep.subr.bf16.mxu0 0
  %186 = vmatpush1.bf16.msra.mxu0 0
  %187 = vmatprep.subr.bf16.mxu0 0
  %188 = vmatpush1.bf16.msra.mxu0 0
  %189 = vmatprep.subr.bf16.mxu0 0
  %190 = vmatpush1.bf16.msra.mxu0 0
  %191 = vmatprep.subr.bf16.mxu0 0
  %192 = vmatpush1.bf16.msra.mxu0 0
  %193 = vmatprep.subr.bf16.mxu0 0
  %194 = vmatpush1.bf16.msra.mxu0 0
  %195 = vmatprep.subr.bf16.mxu0 0
  %196 = vmatpush1.bf16.msra.mxu0 %v179
  %197 = vmatprep.subr.bf16.mxu0 0
  %198 = vmatpush2.bf16.msra.mxu0 0
  %199 = vmatprep.subr.bf16.mxu0 0
  %200 = vmatpush2.bf16.msra.mxu0 0
  %201 = vmatprep.subr.bf16.mxu0 0
  %202 = vmatpush2.bf16.msra.mxu0 0
  %203 = vmatprep.subr.bf16.mxu0 0
  %204 = vmatpush2.bf16.msra.mxu0 0
  %205 = vmatprep.subr.bf16.mxu0 0
  %206 = vmatpush2.bf16.msra.mxu0 0
  %207 = vmatprep.subr.bf16.mxu0 0
  %208 = vmatpush2.bf16.msra.mxu0 0
  %209 = vmatprep.subr.bf16.mxu0 0
  %210 = vmatpush2.bf16.msra.mxu0 0
  %211 = vmatprep.subr.bf16.mxu0 0
  %212 = vmatpush2.bf16.msra.mxu0 0
  %213 = vmatprep.mubr.bf16.mxu0 0
  %214 = vmatmul.mubr.bf16.gmra.mxu0 %v176
  %v215 = vpop.f32.mrf.mxu0
  %v216 = vadd.f32 0.0, %v215
  %v217 = vpop.f32.mrf.mxu0
  %v218 = vpop.f32.mrf.mxu0
  %v219 = vpop.f32.mrf.mxu0
  %220 = vdwg.mxu0
  %v221 = vadd.f32 %v168, %v216
  %s222 = scalar_lea.vmem %s1, 32
  %v223 = vld [vmem:[%s222] sm:$0xff]
  %v224 = vpack.c.bf16 %v223, %v223
  %s225 = scalar_lea.vmem %s0, 16
  %v226 = vld [vmem:[%s225] sm:$0xf]
  %v227 = vpack.c.bf16 %v226, %v226
  %v229 = vsel %vm22, %v224, 0
  %v232 = vsel %vm26, %v227, 0
  %234 = vmatprep.subr.bf16.mxu0 0
  %235 = vmatpush1.bf16.msra.mxu0 0
  %236 = vmatprep.subr.bf16.mxu0 0
  %237 = vmatpush1.bf16.msra.mxu0 0
  %238 = vmatprep.subr.bf16.mxu0 0
  %239 = vmatpush1.bf16.msra.mxu0 0
  %240 = vmatprep.subr.bf16.mxu0 0
  %241 = vmatpush1.bf16.msra.mxu0 0
  %242 = vmatprep.subr.bf16.mxu0 0
  %243 = vmatpush1.bf16.msra.mxu0 0
  %244 = vmatprep.subr.bf16.mxu0 0
  %245 = vmatpush1.bf16.msra.mxu0 0
  %246 = vmatprep.subr.bf16.mxu0 0
  %247 = vmatpush1.bf16.msra.mxu0 0
  %248 = vmatprep.subr.bf16.mxu0 0
  %249 = vmatpush1.bf16.msra.mxu0 %v232
  %250 = vmatprep.subr.bf16.mxu0 0
  %251 = vmatpush2.bf16.msra.mxu0 0
  %252 = vmatprep.subr.bf16.mxu0 0
  %253 = vmatpush2.bf16.msra.mxu0 0
  %254 = vmatprep.subr.bf16.mxu0 0
  %255 = vmatpush2.bf16.msra.mxu0 0
  %256 = vmatprep.subr.bf16.mxu0 0
  %257 = vmatpush2.bf16.msra.mxu0 0
  %258 = vmatprep.subr.bf16.mxu0 0
  %259 = vmatpush2.bf16.msra.mxu0 0
  %260 = vmatprep.subr.bf16.mxu0 0
  %261 = vmatpush2.bf16.msra.mxu0 0
  %262 = vmatprep.subr.bf16.mxu0 0
  %263 = vmatpush2.bf16.msra.mxu0 0
  %264 = vmatprep.subr.bf16.mxu0 0
  %265 = vmatpush2.bf16.msra.mxu0 0
  %266 = vmatprep.mubr.bf16.mxu0 0
  %267 = vmatmul.mubr.bf16.gmra.mxu0 %v229
  %v268 = vpop.f32.mrf.mxu0
  %v269 = vadd.f32 0.0, %v268
  %v270 = vpop.f32.mrf.mxu0
  %v271 = vpop.f32.mrf.mxu0
  %v272 = vpop.f32.mrf.mxu0
  %273 = vdwg.mxu0
  %v274 = vadd.f32 %v221, %v269
  %s275 = scalar_lea.vmem %s1, 40
  %v276 = vld [vmem:[%s275] sm:$0xff]
  %v277 = vpack.c.bf16 %v276, %v276
  %s278 = scalar_lea.vmem %s0, 20
  %v279 = vld [vmem:[%s278] sm:$0xf]
  %v280 = vpack.c.bf16 %v279, %v279
  %v282 = vsel %vm22, %v277, 0
  %v285 = vsel %vm26, %v280, 0
  %287 = vmatprep.subr.bf16.mxu0 0
  %288 = vmatpush1.bf16.msra.mxu0 0
  %289 = vmatprep.subr.bf16.mxu0 0
  %290 = vmatpush1.bf16.msra.mxu0 0
  %291 = vmatprep.subr.bf16.mxu0 0
  %292 = vmatpush1.bf16.msra.mxu0 0
  %293 = vmatprep.subr.bf16.mxu0 0
  %294 = vmatpush1.bf16.msra.mxu0 0
  %295 = vmatprep.subr.bf16.mxu0 0
  %296 = vmatpush1.bf16.msra.mxu0 0
  %297 = vmatprep.subr.bf16.mxu0 0
  %298 = vmatpush1.bf16.msra.mxu0 0
  %299 = vmatprep.subr.bf16.mxu0 0
  %300 = vmatpush1.bf16.msra.mxu0 0
  %301 = vmatprep.subr.bf16.mxu0 0
  %302 = vmatpush1.bf16.msra.mxu0 %v285
  %303 = vmatprep.subr.bf16.mxu0 0
  %304 = vmatpush2.bf16.msra.mxu0 0
  %305 = vmatprep.subr.bf16.mxu0 0
  %306 = vmatpush2.bf16.msra.mxu0 0
  %307 = vmatprep.subr.bf16.mxu0 0
  %308 = vmatpush2.bf16.msra.mxu0 0
  %309 = vmatprep.subr.bf16.mxu0 0
  %310 = vmatpush2.bf16.msra.mxu0 0
  %311 = vmatprep.subr.bf16.mxu0 0
  %312 = vmatpush2.bf16.msra.mxu0 0
  %313 = vmatprep.subr.bf16.mxu0 0
  %314 = vmatpush2.bf16.msra.mxu0 0
  %315 = vmatprep.subr.bf16.mxu0 0
  %316 = vmatpush2.bf16.msra.mxu0 0
  %317 = vmatprep.subr.bf16.mxu0 0
  %318 = vmatpush2.bf16.msra.mxu0 0
  %319 = vmatprep.mubr.bf16.mxu0 0
  %320 = vmatmul.mubr.bf16.gmra.mxu0 %v282
  %v321 = vpop.f32.mrf.mxu0
  %v322 = vadd.f32 0.0, %v321
  %v323 = vpop.f32.mrf.mxu0
  %v324 = vpop.f32.mrf.mxu0
  %v325 = vpop.f32.mrf.mxu0
  %326 = vdwg.mxu0
  %v327 = vadd.f32 %v274, %v322
  %s328 = scalar_lea.vmem %s1, 48
  %v329 = vld [vmem:[%s328] sm:$0xff]
  %v330 = vpack.c.bf16 %v329, %v329
  %s331 = scalar_lea.vmem %s0, 24
  %v332 = vld [vmem:[%s331] sm:$0xf]
  %v333 = vpack.c.bf16 %v332, %v332
  %v335 = vsel %vm22, %v330, 0
  %v338 = vsel %vm26, %v333, 0
  %340 = vmatprep.subr.bf16.mxu0 0
  %341 = vmatpush1.bf16.msra.mxu0 0
  %342 = vmatprep.subr.bf16.mxu0 0
  %343 = vmatpush1.bf16.msra.mxu0 0
  %344 = vmatprep.subr.bf16.mxu0 0
  %345 = vmatpush1.bf16.msra.mxu0 0
  %346 = vmatprep.subr.bf16.mxu0 0
  %347 = vmatpush1.bf16.msra.mxu0 0
  %348 = vmatprep.subr.bf16.mxu0 0
  %349 = vmatpush1.bf16.msra.mxu0 0
  %350 = vmatprep.subr.bf16.mxu0 0
  %351 = vmatpush1.bf16.msra.mxu0 0
  %352 = vmatprep.subr.bf16.mxu0 0
  %353 = vmatpush1.bf16.msra.mxu0 0
  %354 = vmatprep.subr.bf16.mxu0 0
  %355 = vmatpush1.bf16.msra.mxu0 %v338
  %356 = vmatprep.subr.bf16.mxu0 0
  %357 = vmatpush2.bf16.msra.mxu0 0
  %358 = vmatprep.subr.bf16.mxu0 0
  %359 = vmatpush2.bf16.msra.mxu0 0
  %360 = vmatprep.subr.bf16.mxu0 0
  %361 = vmatpush2.bf16.msra.mxu0 0
  %362 = vmatprep.subr.bf16.mxu0 0
  %363 = vmatpush2.bf16.msra.mxu0 0
  %364 = vmatprep.subr.bf16.mxu0 0
  %365 = vmatpush2.bf16.msra.mxu0 0
  %366 = vmatprep.subr.bf16.mxu0 0
  %367 = vmatpush2.bf16.msra.mxu0 0
  %368 = vmatprep.subr.bf16.mxu0 0
  %369 = vmatpush2.bf16.msra.mxu0 0
  %370 = vmatprep.subr.bf16.mxu0 0
  %371 = vmatpush2.bf16.msra.mxu0 0
  %372 = vmatprep.mubr.bf16.mxu0 0
  %373 = vmatmul.mubr.bf16.gmra.mxu0 %v335
  %v374 = vpop.f32.mrf.mxu0
  %v375 = vadd.f32 0.0, %v374
  %v376 = vpop.f32.mrf.mxu0
  %v377 = vpop.f32.mrf.mxu0
  %v378 = vpop.f32.mrf.mxu0
  %379 = vdwg.mxu0
  %v380 = vadd.f32 %v327, %v375
  %s381 = scalar_lea.vmem %s1, 56
  %v382 = vld [vmem:[%s381] sm:$0xff]
  %v383 = vpack.c.bf16 %v382, %v382
  %s384 = scalar_lea.vmem %s0, 28
  %v385 = vld [vmem:[%s384] sm:$0xf]
  %v386 = vpack.c.bf16 %v385, %v385
  %v388 = vsel %vm22, %v383, 0
  %v391 = vsel %vm26, %v386, 0
  %393 = vmatprep.subr.bf16.mxu0 0
  %394 = vmatpush1.bf16.msra.mxu0 0
  %395 = vmatprep.subr.bf16.mxu0 0
  %396 = vmatpush1.bf16.msra.mxu0 0
  %397 = vmatprep.subr.bf16.mxu0 0
  %398 = vmatpush1.bf16.msra.mxu0 0
  %399 = vmatprep.subr.bf16.mxu0 0
  %400 = vmatpush1.bf16.msra.mxu0 0
  %401 = vmatprep.subr.bf16.mxu0 0
  %402 = vmatpush1.bf16.msra.mxu0 0
  %403 = vmatprep.subr.bf16.mxu0 0
  %404 = vmatpush1.bf16.msra.mxu0 0
  %405 = vmatprep.subr.bf16.mxu0 0
  %406 = vmatpush1.bf16.msra.mxu0 0
  %407 = vmatprep.subr.bf16.mxu0 0
  %408 = vmatpush1.bf16.msra.mxu0 %v391
  %409 = vmatprep.subr.bf16.mxu0 0
  %410 = vmatpush2.bf16.msra.mxu0 0
  %411 = vmatprep.subr.bf16.mxu0 0
  %412 = vmatpush2.bf16.msra.mxu0 0
  %413 = vmatprep.subr.bf16.mxu0 0
  %414 = vmatpush2.bf16.msra.mxu0 0
  %415 = vmatprep.subr.bf16.mxu0 0
  %416 = vmatpush2.bf16.msra.mxu0 0
  %417 = vmatprep.subr.bf16.mxu0 0
  %418 = vmatpush2.bf16.msra.mxu0 0
  %419 = vmatprep.subr.bf16.mxu0 0
  %420 = vmatpush2.bf16.msra.mxu0 0
  %421 = vmatprep.subr.bf16.mxu0 0
  %422 = vmatpush2.bf16.msra.mxu0 0
  %423 = vmatprep.subr.bf16.mxu0 0
  %424 = vmatpush2.bf16.msra.mxu0 0
  %425 = vmatprep.mubr.bf16.mxu0 0
  %426 = vmatmul.mubr.bf16.gmra.mxu0 %v388
  %v427 = vpop.f32.mrf.mxu0
  %v428 = vadd.f32 0.0, %v427
  %v429 = vpop.f32.mrf.mxu0
  %v430 = vpop.f32.mrf.mxu0
  %v431 = vpop.f32.mrf.mxu0
  %432 = vdwg.mxu0
  %v433 = vadd.f32 %v380, %v428
  %s434 = scalar_lea.vmem %s1, 64
  %v435 = vld [vmem:[%s434] sm:$0xff]
  %v436 = vpack.c.bf16 %v435, %v435
  %s437 = scalar_lea.vmem %s0, 32
  %v438 = vld [vmem:[%s437] sm:$0xf]
  %v439 = vpack.c.bf16 %v438, %v438
  %v441 = vsel %vm22, %v436, 0
  %v444 = vsel %vm26, %v439, 0
  %446 = vmatprep.subr.bf16.mxu0 0
  %447 = vmatpush1.bf16.msra.mxu0 0
  %448 = vmatprep.subr.bf16.mxu0 0
  %449 = vmatpush1.bf16.msra.mxu0 0
  %450 = vmatprep.subr.bf16.mxu0 0
  %451 = vmatpush1.bf16.msra.mxu0 0
  %452 = vmatprep.subr.bf16.mxu0 0
  %453 = vmatpush1.bf16.msra.mxu0 0
  %454 = vmatprep.subr.bf16.mxu0 0
  %455 = vmatpush1.bf16.msra.mxu0 0
  %456 = vmatprep.subr.bf16.mxu0 0
  %457 = vmatpush1.bf16.msra.mxu0 0
  %458 = vmatprep.subr.bf16.mxu0 0
  %459 = vmatpush1.bf16.msra.mxu0 0
  %460 = vmatprep.subr.bf16.mxu0 0
  %461 = vmatpush1.bf16.msra.mxu0 %v444
  %462 = vmatprep.subr.bf16.mxu0 0
  %463 = vmatpush2.bf16.msra.mxu0 0
  %464 = vmatprep.subr.bf16.mxu0 0
  %465 = vmatpush2.bf16.msra.mxu0 0
  %466 = vmatprep.subr.bf16.mxu0 0
  %467 = vmatpush2.bf16.msra.mxu0 0
  %468 = vmatprep.subr.bf16.mxu0 0
  %469 = vmatpush2.bf16.msra.mxu0 0
  %470 = vmatprep.subr.bf16.mxu0 0
  %471 = vmatpush2.bf16.msra.mxu0 0
  %472 = vmatprep.subr.bf16.mxu0 0
  %473 = vmatpush2.bf16.msra.mxu0 0
  %474 = vmatprep.subr.bf16.mxu0 0
  %475 = vmatpush2.bf16.msra.mxu0 0
  %476 = vmatprep.subr.bf16.mxu0 0
  %477 = vmatpush2.bf16.msra.mxu0 0
  %478 = vmatprep.mubr.bf16.mxu0 0
  %479 = vmatmul.mubr.bf16.gmra.mxu0 %v441
  %v480 = vpop.f32.mrf.mxu0
  %v481 = vadd.f32 0.0, %v480
  %v482 = vpop.f32.mrf.mxu0
  %v483 = vpop.f32.mrf.mxu0
  %v484 = vpop.f32.mrf.mxu0
  %485 = vdwg.mxu0
  %v486 = vadd.f32 %v433, %v481
  %487 = vadd.xlane.f32.xlu0 %v486
  %v488 = vpop.xlane.xlu0 %487
  %v489 = vmul.f32 %v488, 0.0078125
  %v490 = vsub.f32 %v486, %v489
  %v491 = vmul.f32 %v490, %v490
  %492 = vadd.xlane.f32.xlu0 %v491
  %v493 = vpop.xlane.xlu0 %492
  %v494 = vmul.f32 %v493, 0.0078125
  %v495 = vadd.f32 %v494, 0.001
  %v496 = vrsqrt.pop %v495
  %v497 = vmul.f32 %v490, %v496
  %v498 = vmax.f32 %v497, 0.0
  %499 = vst [vmem:[%s2] sm:$0xff] %v498
  // Predicated region
  $region10: #{downsample_forward.5} parent=0 // pred_check
    _
  $region11: #{downsample_forward.5} parent=0 // pred_check_branch
    %501 = sbr.rel (0) target = $region13
  $region12: #{downsample_forward.5} parent=0 // pred_region
    _
  $region13: #{downsample_forward.5} parent=0 // pred_fallthru
    _
  // Predicated region
  $region14: #{downsample_forward.5} parent=0 // pred_check
    _
  $region15: #{downsample_forward.5} parent=0 // pred_check_branch
    %503 = sbr.rel (0) target = $region17
  $region16: #{downsample_forward.5} parent=0 // pred_region
    _
  $region17: #{downsample_forward.5} parent=0 // pred_fallthru
    _

// kernel: downsample_forward.7
$region0: #{downsample_forward.7}
  #allocation0 [shape = 'u32[]', space=smem, size = 0x4, offset = 0x4, fixed_abs, tag = 'smem constant byte address 0x4 - core index']
  #allocation1 [shape = 'u32[144,128]{1,0:T(1,128)}', space=vmem, size = 0x12000, scoped, tag = 'internal scratch']
  %s0 = inlined_call_operand.vmem [shape: f32[9,8,32], index: 0, kind: input, shape index: {}]
  %s1 = inlined_call_operand.vmem [shape: f32[9,16,8], index: 1, kind: input, shape index: {}]
  %s2 = inlined_call_operand.vmem [shape: f32[16,32], index: 2, kind: output, shape index: {}]
  %s3 = sld [smem:[#allocation0]]
  $region18: #{downsample_forward.7} parent=0
    _
  %s5 = ssub.s32 1, %s3
  %s6 = scalar_select 0, %s5, %s3
  // Predicated region
  $region2: #{downsample_forward.7} parent=0 // pred_check
    _
  $region3: #{downsample_forward.7} parent=0 // pred_check_branch
    %8 = sbr.rel (0) target = $region5
  $region4: #{downsample_forward.7} parent=0 // pred_region
    _
  $region5: #{downsample_forward.7} parent=0 // pred_fallthru
    _
  // Predicated region
  $region6: #{downsample_forward.7} parent=0 // pred_check
    _
  $region7: #{downsample_forward.7} parent=0 // pred_check_branch
    %10 = sbr.rel (0) target = $region9
  $region8: #{downsample_forward.7} parent=0 // pred_region
    _
  $region9: #{downsample_forward.7} parent=0 // pred_fallthru
    _
  %v12 = vld [vmem:[%s1] sm:$0xff]
  %v13 = vld [vmem:[%s1 + $0x8] sm:$0xff]
  %v14 = vpack.c.bf16 %v13, %v12
  %v15 = vld [vmem:[%s0] sm:$0xff]
  %v16 = vpack.c.bf16 %v15, %v15
  %s17 = scalar_lea.vmem %s1, 16
  %v18 = vld [vmem:[%s17] sm:$0xff]
  %v19 = vld [vmem:[%s17 + $0x8] sm:$0xff]
  %v20 = vpack.c.bf16 %v19, %v18
  %s21 = scalar_lea.vmem %s0, 8
  %v22 = vld [vmem:[%s21] sm:$0xff]
  %v23 = vpack.c.bf16 %v22, %v22
  %vm24 = vcmask 64512
  %v26 = vsel %vm24, %v20, 0
  %vm28 = vcmask 1043456
  %v30 = vsel %vm28, %v23, 0
  %32 = vmatprep.subr.bf16.mxu0 0
  %33 = vmatpush1.bf16.msra.mxu0 0
  %34 = vmatprep.subr.bf16.mxu0 0
  %35 = vmatpush1.bf16.msra.mxu0 0
  %36 = vmatprep.subr.bf16.mxu0 0
  %37 = vmatpush1.bf16.msra.mxu0 0
  %38 = vmatprep.subr.bf16.mxu0 0
  %39 = vmatpush1.bf16.msra.mxu0 0
  %40 = vmatprep.subr.bf16.mxu0 0
  %41 = vmatpush1.bf16.msra.mxu0 0
  %42 = vmatprep.subr.bf16.mxu0 0
  %43 = vmatpush1.bf16.msra.mxu0 0
  %44 = vmatprep.subr.bf16.mxu0 0
  %45 = vmatpush1.bf16.msra.mxu0 0
  %46 = vmatprep.subr.bf16.mxu0 0
  %47 = vmatpush1.bf16.msra.mxu0 %v30
  %48 = vmatprep.subr.bf16.mxu0 0
  %49 = vmatpush2.bf16.msra.mxu0 0
  %50 = vmatprep.subr.bf16.mxu0 0
  %51 = vmatpush2.bf16.msra.mxu0 0
  %52 = vmatprep.subr.bf16.mxu0 0
  %53 = vmatpush2.bf16.msra.mxu0 0
  %54 = vmatprep.subr.bf16.mxu0 0
  %55 = vmatpush2.bf16.msra.mxu0 0
  %56 = vmatprep.subr.bf16.mxu0 0
  %57 = vmatpush2.bf16.msra.mxu0 0
  %58 = vmatprep.subr.bf16.mxu0 0
  %59 = vmatpush2.bf16.msra.mxu0 0
  %60 = vmatprep.subr.bf16.mxu0 0
  %61 = vmatpush2.bf16.msra.mxu0 0
  %62 = vmatprep.subr.bf16.mxu0 0
  %63 = vmatpush2.bf16.msra.mxu0 0
  %64 = vmatprep.mubr.bf16.mxu0 0
  %65 = vmatmul.mubr.bf16.gmra.mxu0 %v26
  %v66 = vpop.f32.mrf.mxu0
  %v67 = vadd.f32 0.0, %v66
  %v68 = vpop.f32.mrf.mxu0
  %v69 = vpop.f32.mrf.mxu0
  %v70 = vadd.f32 0.0, %v69
  %v71 = vpop.f32.mrf.mxu0
  %72 = vdwg.mxu0
  %v74 = vsel %vm24, %v14, 0
  %v77 = vsel %vm28, %v16, 0
  %79 = vmatprep.subr.bf16.mxu0 0
  %80 = vmatpush1.bf16.msra.mxu0 0
  %81 = vmatprep.subr.bf16.mxu0 0
  %82 = vmatpush1.bf16.msra.mxu0 0
  %83 = vmatprep.subr.bf16.mxu0 0
  %84 = vmatpush1.bf16.msra.mxu0 0
  %85 = vmatprep.subr.bf16.mxu0 0
  %86 = vmatpush1.bf16.msra.mxu0 0
  %87 = vmatprep.subr.bf16.mxu0 0
  %88 = vmatpush1.bf16.msra.mxu0 0
  %89 = vmatprep.subr.bf16.mxu0 0
  %90 = vmatpush1.bf16.msra.mxu0 0
  %91 = vmatprep.subr.bf16.mxu0 0
  %92 = vmatpush1.bf16.msra.mxu0 0
  %93 = vmatprep.subr.bf16.mxu0 0
  %94 = vmatpush1.bf16.msra.mxu0 %v77
  %95 = vmatprep.subr.bf16.mxu0 0
  %96 = vmatpush2.bf16.msra.mxu0 0
  %97 = vmatprep.subr.bf16.mxu0 0
  %98 = vmatpush2.bf16.msra.mxu0 0
  %99 = vmatprep.subr.bf16.mxu0 0
  %100 = vmatpush2.bf16.msra.mxu0 0
  %101 = vmatprep.subr.bf16.mxu0 0
  %102 = vmatpush2.bf16.msra.mxu0 0
  %103 = vmatprep.subr.bf16.mxu0 0
  %104 = vmatpush2.bf16.msra.mxu0 0
  %105 = vmatprep.subr.bf16.mxu0 0
  %106 = vmatpush2.bf16.msra.mxu0 0
  %107 = vmatprep.subr.bf16.mxu0 0
  %108 = vmatpush2.bf16.msra.mxu0 0
  %109 = vmatprep.subr.bf16.mxu0 0
  %110 = vmatpush2.bf16.msra.mxu0 0
  %111 = vmatprep.mubr.bf16.mxu0 0
  %112 = vmatmul.mubr.bf16.gmra.mxu0 %v74
  %v113 = vpop.f32.mrf.mxu0
  %v114 = vadd.f32 %v67, %v113
  %v115 = vpop.f32.mrf.mxu0
  %v116 = vpop.f32.mrf.mxu0
  %v117 = vadd.f32 %v70, %v116
  %v118 = vpop.f32.mrf.mxu0
  %119 = vdwg.mxu0
  %s120 = scalar_lea.vmem %s1, 32
  %v121 = vld [vmem:[%s120] sm:$0xff]
  %v122 = vld [vmem:[%s120 + $0x8] sm:$0xff]
  %v123 = vpack.c.bf16 %v122, %v121
  %s124 = scalar_lea.vmem %s0, 16
  %v125 = vld [vmem:[%s124] sm:$0xff]
  %v126 = vpack.c.bf16 %v125, %v125
  %v128 = vsel %vm24, %v123, 0
  %v131 = vsel %vm28, %v126, 0
  %133 = vmatprep.subr.bf16.mxu0 0
  %134 = vmatpush1.bf16.msra.mxu0 0
  %135 = vmatprep.subr.bf16.mxu0 0
  %136 = vmatpush1.bf16.msra.mxu0 0
  %137 = vmatprep.subr.bf16.mxu0 0
  %138 = vmatpush1.bf16.msra.mxu0 0
  %139 = vmatprep.subr.bf16.mxu0 0
  %140 = vmatpush1.bf16.msra.mxu0 0
  %141 = vmatprep.subr.bf16.mxu0 0
  %142 = vmatpush1.bf16.msra.mxu0 0
  %143 = vmatprep.subr.bf16.mxu0 0
  %144 = vmatpush1.bf16.msra.mxu0 0
  %145 = vmatprep.subr.bf16.mxu0 0
  %146 = vmatpush1.bf16.msra.mxu0 0
  %147 = vmatprep.subr.bf16.mxu0 0
  %148 = vmatpush1.bf16.msra.mxu0 %v131
  %149 = vmatprep.subr.bf16.mxu0 0
  %150 = vmatpush2.bf16.msra.mxu0 0
  %151 = vmatprep.subr.bf16.mxu0 0
  %152 = vmatpush2.bf16.msra.mxu0 0
  %153 = vmatprep.subr.bf16.mxu0 0
  %154 = vmatpush2.bf16.msra.mxu0 0
  %155 = vmatprep.subr.bf16.mxu0 0
  %156 = vmatpush2.bf16.msra.mxu0 0
  %157 = vmatprep.subr.bf16.mxu0 0
  %158 = vmatpush2.bf16.msra.mxu0 0
  %159 = vmatprep.subr.bf16.mxu0 0
  %160 = vmatpush2.bf16.msra.mxu0 0
  %161 = vmatprep.subr.bf16.mxu0 0
  %162 = vmatpush2.bf16.msra.mxu0 0
  %163 = vmatprep.subr.bf16.mxu0 0
  %164 = vmatpush2.bf16.msra.mxu0 0
  %165 = vmatprep.mubr.bf16.mxu0 0
  %166 = vmatmul.mubr.bf16.gmra.mxu0 %v128
  %v167 = vpop.f32.mrf.mxu0
  %v168 = vadd.f32 0.0, %v167
  %v169 = vpop.f32.mrf.mxu0
  %v170 = vpop.f32.mrf.mxu0
  %v171 = vadd.f32 0.0, %v170
  %v172 = vpop.f32.mrf.mxu0
  %173 = vdwg.mxu0
  %v174 = vadd.f32 %v114, %v168
  %v175 = vadd.f32 %v117, %v171
  %s176 = scalar_lea.vmem %s1, 48
  %v177 = vld [vmem:[%s176] sm:$0xff]
  %v178 = vld [vmem:[%s176 + $0x8] sm:$0xff]
  %v179 = vpack.c.bf16 %v178, %v177
  %s180 = scalar_lea.vmem %s0, 24
  %v181 = vld [vmem:[%s180] sm:$0xff]
  %v182 = vpack.c.bf16 %v181, %v181
  %v184 = vsel %vm24, %v179, 0
  %v187 = vsel %vm28, %v182, 0
  %189 = vmatprep.subr.bf16.mxu0 0
  %190 = vmatpush1.bf16.msra.mxu0 0
  %191 = vmatprep.subr.bf16.mxu0 0
  %192 = vmatpush1.bf16.msra.mxu0 0
  %193 = vmatprep.subr.bf16.mxu0 0
  %194 = vmatpush1.bf16.msra.mxu0 0
  %195 = vmatprep.subr.bf16.mxu0 0
  %196 = vmatpush1.bf16.msra.mxu0 0
  %197 = vmatprep.subr.bf16.mxu0 0
  %198 = vmatpush1.bf16.msra.mxu0 0
  %199 = vmatprep.subr.bf16.mxu0 0
  %200 = vmatpush1.bf16.msra.mxu0 0
  %201 = vmatprep.subr.bf16.mxu0 0
  %202 = vmatpush1.bf16.msra.mxu0 0
  %203 = vmatprep.subr.bf16.mxu0 0
  %204 = vmatpush1.bf16.msra.mxu0 %v187
  %205 = vmatprep.subr.bf16.mxu0 0
  %206 = vmatpush2.bf16.msra.mxu0 0
  %207 = vmatprep.subr.bf16.mxu0 0
  %208 = vmatpush2.bf16.msra.mxu0 0
  %209 = vmatprep.subr.bf16.mxu0 0
  %210 = vmatpush2.bf16.msra.mxu0 0
  %211 = vmatprep.subr.bf16.mxu0 0
  %212 = vmatpush2.bf16.msra.mxu0 0
  %213 = vmatprep.subr.bf16.mxu0 0
  %214 = vmatpush2.bf16.msra.mxu0 0
  %215 = vmatprep.subr.bf16.mxu0 0
  %216 = vmatpush2.bf16.msra.mxu0 0
  %217 = vmatprep.subr.bf16.mxu0 0
  %218 = vmatpush2.bf16.msra.mxu0 0
  %219 = vmatprep.subr.bf16.mxu0 0
  %220 = vmatpush2.bf16.msra.mxu0 0
  %221 = vmatprep.mubr.bf16.mxu0 0
  %222 = vmatmul.mubr.bf16.gmra.mxu0 %v184
  %v223 = vpop.f32.mrf.mxu0
  %v224 = vadd.f32 0.0, %v223
  %v225 = vpop.f32.mrf.mxu0
  %v226 = vpop.f32.mrf.mxu0
  %v227 = vadd.f32 0.0, %v226
  %v228 = vpop.f32.mrf.mxu0
  %229 = vdwg.mxu0
  %v230 = vadd.f32 %v174, %v224
  %v231 = vadd.f32 %v175, %v227
  %s232 = scalar_lea.vmem %s1, 64
  %v233 = vld [vmem:[%s232] sm:$0xff]
  %v234 = vld [vmem:[%s232 + $0x8] sm:$0xff]
  %v235 = vpack.c.bf16 %v234, %v233
  %s236 = scalar_lea.vmem %s0, 32
  %v237 = vld [vmem:[%s236] sm:$0xff]
  %v238 = vpack.c.bf16 %v237, %v237
  %v240 = vsel %vm24, %v235, 0
  %v243 = vsel %vm28, %v238, 0
  %245 = vmatprep.subr.bf16.mxu0 0
  %246 = vmatpush1.bf16.msra.mxu0 0
  %247 = vmatprep.subr.bf16.mxu0 0
  %248 = vmatpush1.bf16.msra.mxu0 0
  %249 = vmatprep.subr.bf16.mxu0 0
  %250 = vmatpush1.bf16.msra.mxu0 0
  %251 = vmatprep.subr.bf16.mxu0 0
  %252 = vmatpush1.bf16.msra.mxu0 0
  %253 = vmatprep.subr.bf16.mxu0 0
  %254 = vmatpush1.bf16.msra.mxu0 0
  %255 = vmatprep.subr.bf16.mxu0 0
  %256 = vmatpush1.bf16.msra.mxu0 0
  %257 = vmatprep.subr.bf16.mxu0 0
  %258 = vmatpush1.bf16.msra.mxu0 0
  %259 = vmatprep.subr.bf16.mxu0 0
  %260 = vmatpush1.bf16.msra.mxu0 %v243
  %261 = vmatprep.subr.bf16.mxu0 0
  %262 = vmatpush2.bf16.msra.mxu0 0
  %263 = vmatprep.subr.bf16.mxu0 0
  %264 = vmatpush2.bf16.msra.mxu0 0
  %265 = vmatprep.subr.bf16.mxu0 0
  %266 = vmatpush2.bf16.msra.mxu0 0
  %267 = vmatprep.subr.bf16.mxu0 0
  %268 = vmatpush2.bf16.msra.mxu0 0
  %269 = vmatprep.subr.bf16.mxu0 0
  %270 = vmatpush2.bf16.msra.mxu0 0
  %271 = vmatprep.subr.bf16.mxu0 0
  %272 = vmatpush2.bf16.msra.mxu0 0
  %273 = vmatprep.subr.bf16.mxu0 0
  %274 = vmatpush2.bf16.msra.mxu0 0
  %275 = vmatprep.subr.bf16.mxu0 0
  %276 = vmatpush2.bf16.msra.mxu0 0
  %277 = vmatprep.mubr.bf16.mxu0 0
  %278 = vmatmul.mubr.bf16.gmra.mxu0 %v240
  %v279 = vpop.f32.mrf.mxu0
  %v280 = vadd.f32 0.0, %v279
  %v281 = vpop.f32.mrf.mxu0
  %v282 = vpop.f32.mrf.mxu0
  %v283 = vadd.f32 0.0, %v282
  %v284 = vpop.f32.mrf.mxu0
  %285 = vdwg.mxu0
  %v286 = vadd.f32 %v230, %v280
  %v287 = vadd.f32 %v231, %v283
  %s288 = scalar_lea.vmem %s1, 80
  %v289 = vld [vmem:[%s288] sm:$0xff]
  %v290 = vld [vmem:[%s288 + $0x8] sm:$0xff]
  %v291 = vpack.c.bf16 %v290, %v289
  %s292 = scalar_lea.vmem %s0, 40
  %v293 = vld [vmem:[%s292] sm:$0xff]
  %v294 = vpack.c.bf16 %v293, %v293
  %v296 = vsel %vm24, %v291, 0
  %v299 = vsel %vm28, %v294, 0
  %301 = vmatprep.subr.bf16.mxu0 0
  %302 = vmatpush1.bf16.msra.mxu0 0
  %303 = vmatprep.subr.bf16.mxu0 0
  %304 = vmatpush1.bf16.msra.mxu0 0
  %305 = vmatprep.subr.bf16.mxu0 0
  %306 = vmatpush1.bf16.msra.mxu0 0
  %307 = vmatprep.subr.bf16.mxu0 0
  %308 = vmatpush1.bf16.msra.mxu0 0
  %309 = vmatprep.subr.bf16.mxu0 0
  %310 = vmatpush1.bf16.msra.mxu0 0
  %311 = vmatprep.subr.bf16.mxu0 0
  %312 = vmatpush1.bf16.msra.mxu0 0
  %313 = vmatprep.subr.bf16.mxu0 0
  %314 = vmatpush1.bf16.msra.mxu0 0
  %315 = vmatprep.subr.bf16.mxu0 0
  %316 = vmatpush1.bf16.msra.mxu0 %v299
  %317 = vmatprep.subr.bf16.mxu0 0
  %318 = vmatpush2.bf16.msra.mxu0 0
  %319 = vmatprep.subr.bf16.mxu0 0
  %320 = vmatpush2.bf16.msra.mxu0 0
  %321 = vmatprep.subr.bf16.mxu0 0
  %322 = vmatpush2.bf16.msra.mxu0 0
  %323 = vmatprep.subr.bf16.mxu0 0
  %324 = vmatpush2.bf16.msra.mxu0 0
  %325 = vmatprep.subr.bf16.mxu0 0
  %326 = vmatpush2.bf16.msra.mxu0 0
  %327 = vmatprep.subr.bf16.mxu0 0
  %328 = vmatpush2.bf16.msra.mxu0 0
  %329 = vmatprep.subr.bf16.mxu0 0
  %330 = vmatpush2.bf16.msra.mxu0 0
  %331 = vmatprep.subr.bf16.mxu0 0
  %332 = vmatpush2.bf16.msra.mxu0 0
  %333 = vmatprep.mubr.bf16.mxu0 0
  %334 = vmatmul.mubr.bf16.gmra.mxu0 %v296
  %v335 = vpop.f32.mrf.mxu0
  %v336 = vadd.f32 0.0, %v335
  %v337 = vpop.f32.mrf.mxu0
  %v338 = vpop.f32.mrf.mxu0
  %v339 = vadd.f32 0.0, %v338
  %v340 = vpop.f32.mrf.mxu0
  %341 = vdwg.mxu0
  %v342 = vadd.f32 %v286, %v336
  %v343 = vadd.f32 %v287, %v339
  %s344 = scalar_lea.vmem %s1, 96
  %v345 = vld [vmem:[%s344] sm:$0xff]
  %v346 = vld [vmem:[%s344 + $0x8] sm:$0xff]
  %v347 = vpack.c.bf16 %v346, %v345
  %s348 = scalar_lea.vmem %s0, 48
  %v349 = vld [vmem:[%s348] sm:$0xff]
  %v350 = vpack.c.bf16 %v349, %v349
  %v352 = vsel %vm24, %v347, 0
  %v355 = vsel %vm28, %v350, 0
  %357 = vmatprep.subr.bf16.mxu0 0
  %358 = vmatpush1.bf16.msra.mxu0 0
  %359 = vmatprep.subr.bf16.mxu0 0
  %360 = vmatpush1.bf16.msra.mxu0 0
  %361 = vmatprep.subr.bf16.mxu0 0
  %362 = vmatpush1.bf16.msra.mxu0 0
  %363 = vmatprep.subr.bf16.mxu0 0
  %364 = vmatpush1.bf16.msra.mxu0 0
  %365 = vmatprep.subr.bf16.mxu0 0
  %366 = vmatpush1.bf16.msra.mxu0 0
  %367 = vmatprep.subr.bf16.mxu0 0
  %368 = vmatpush1.bf16.msra.mxu0 0
  %369 = vmatprep.subr.bf16.mxu0 0
  %370 = vmatpush1.bf16.msra.mxu0 0
  %371 = vmatprep.subr.bf16.mxu0 0
  %372 = vmatpush1.bf16.msra.mxu0 %v355
  %373 = vmatprep.subr.bf16.mxu0 0
  %374 = vmatpush2.bf16.msra.mxu0 0
  %375 = vmatprep.subr.bf16.mxu0 0
  %376 = vmatpush2.bf16.msra.mxu0 0
  %377 = vmatprep.subr.bf16.mxu0 0
  %378 = vmatpush2.bf16.msra.mxu0 0
  %379 = vmatprep.subr.bf16.mxu0 0
  %380 = vmatpush2.bf16.msra.mxu0 0
  %381 = vmatprep.subr.bf16.mxu0 0
  %382 = vmatpush2.bf16.msra.mxu0 0
  %383 = vmatprep.subr.bf16.mxu0 0
  %384 = vmatpush2.bf16.msra.mxu0 0
  %385 = vmatprep.subr.bf16.mxu0 0
  %386 = vmatpush2.bf16.msra.mxu0 0
  %387 = vmatprep.subr.bf16.mxu0 0
  %388 = vmatpush2.bf16.msra.mxu0 0
  %389 = vmatprep.mubr.bf16.mxu0 0
  %390 = vmatmul.mubr.bf16.gmra.mxu0 %v352
  %v391 = vpop.f32.mrf.mxu0
  %v392 = vadd.f32 0.0, %v391
  %v393 = vpop.f32.mrf.mxu0
  %v394 = vpop.f32.mrf.mxu0
  %v395 = vadd.f32 0.0, %v394
  %v396 = vpop.f32.mrf.mxu0
  %397 = vdwg.mxu0
  %v398 = vadd.f32 %v342, %v392
  %v399 = vadd.f32 %v343, %v395
  %s400 = scalar_lea.vmem %s1, 112
  %v401 = vld [vmem:[%s400] sm:$0xff]
  %v402 = vld [vmem:[%s400 + $0x8] sm:$0xff]
  %v403 = vpack.c.bf16 %v402, %v401
  %s404 = scalar_lea.vmem %s0, 56
  %v405 = vld [vmem:[%s404] sm:$0xff]
  %v406 = vpack.c.bf16 %v405, %v405
  %v408 = vsel %vm24, %v403, 0
  %v411 = vsel %vm28, %v406, 0
  %413 = vmatprep.subr.bf16.mxu0 0
  %414 = vmatpush1.bf16.msra.mxu0 0
  %415 = vmatprep.subr.bf16.mxu0 0
  %416 = vmatpush1.bf16.msra.mxu0 0
  %417 = vmatprep.subr.bf16.mxu0 0
  %418 = vmatpush1.bf16.msra.mxu0 0
  %419 = vmatprep.subr.bf16.mxu0 0
  %420 = vmatpush1.bf16.msra.mxu0 0
  %421 = vmatprep.subr.bf16.mxu0 0
  %422 = vmatpush1.bf16.msra.mxu0 0
  %423 = vmatprep.subr.bf16.mxu0 0
  %424 = vmatpush1.bf16.msra.mxu0 0
  %425 = vmatprep.subr.bf16.mxu0 0
  %426 = vmatpush1.bf16.msra.mxu0 0
  %427 = vmatprep.subr.bf16.mxu0 0
  %428 = vmatpush1.bf16.msra.mxu0 %v411
  %429 = vmatprep.subr.bf16.mxu0 0
  %430 = vmatpush2.bf16.msra.mxu0 0
  %431 = vmatprep.subr.bf16.mxu0 0
  %432 = vmatpush2.bf16.msra.mxu0 0
  %433 = vmatprep.subr.bf16.mxu0 0
  %434 = vmatpush2.bf16.msra.mxu0 0
  %435 = vmatprep.subr.bf16.mxu0 0
  %436 = vmatpush2.bf16.msra.mxu0 0
  %437 = vmatprep.subr.bf16.mxu0 0
  %438 = vmatpush2.bf16.msra.mxu0 0
  %439 = vmatprep.subr.bf16.mxu0 0
  %440 = vmatpush2.bf16.msra.mxu0 0
  %441 = vmatprep.subr.bf16.mxu0 0
  %442 = vmatpush2.bf16.msra.mxu0 0
  %443 = vmatprep.subr.bf16.mxu0 0
  %444 = vmatpush2.bf16.msra.mxu0 0
  %445 = vmatprep.mubr.bf16.mxu0 0
  %446 = vmatmul.mubr.bf16.gmra.mxu0 %v408
  %v447 = vpop.f32.mrf.mxu0
  %v448 = vadd.f32 0.0, %v447
  %v449 = vpop.f32.mrf.mxu0
  %v450 = vpop.f32.mrf.mxu0
  %v451 = vadd.f32 0.0, %v450
  %v452 = vpop.f32.mrf.mxu0
  %453 = vdwg.mxu0
  %v454 = vadd.f32 %v398, %v448
  %v455 = vadd.f32 %v399, %v451
  %s456 = scalar_lea.vmem %s1, 128
  %v457 = vld [vmem:[%s456] sm:$0xff]
  %v458 = vld [vmem:[%s456 + $0x8] sm:$0xff]
  %v459 = vpack.c.bf16 %v458, %v457
  %s460 = scalar_lea.vmem %s0, 64
  %v461 = vld [vmem:[%s460] sm:$0xff]
  %v462 = vpack.c.bf16 %v461, %v461
  %v464 = vsel %vm24, %v459, 0
  %v467 = vsel %vm28, %v462, 0
  %469 = vmatprep.subr.bf16.mxu0 0
  %470 = vmatpush1.bf16.msra.mxu0 0
  %471 = vmatprep.subr.bf16.mxu0 0
  %472 = vmatpush1.bf16.msra.mxu0 0
  %473 = vmatprep.subr.bf16.mxu0 0
  %474 = vmatpush1.bf16.msra.mxu0 0
  %475 = vmatprep.subr.bf16.mxu0 0
  %476 = vmatpush1.bf16.msra.mxu0 0
  %477 = vmatprep.subr.bf16.mxu0 0
  %478 = vmatpush1.bf16.msra.mxu0 0
  %479 = vmatprep.subr.bf16.mxu0 0
  %480 = vmatpush1.bf16.msra.mxu0 0
  %481 = vmatprep.subr.bf16.mxu0 0
  %482 = vmatpush1.bf16.msra.mxu0 0
  %483 = vmatprep.subr.bf16.mxu0 0
  %484 = vmatpush1.bf16.msra.mxu0 %v467
  %485 = vmatprep.subr.bf16.mxu0 0
  %486 = vmatpush2.bf16.msra.mxu0 0
  %487 = vmatprep.subr.bf16.mxu0 0
  %488 = vmatpush2.bf16.msra.mxu0 0
  %489 = vmatprep.subr.bf16.mxu0 0
  %490 = vmatpush2.bf16.msra.mxu0 0
  %491 = vmatprep.subr.bf16.mxu0 0
  %492 = vmatpush2.bf16.msra.mxu0 0
  %493 = vmatprep.subr.bf16.mxu0 0
  %494 = vmatpush2.bf16.msra.mxu0 0
  %495 = vmatprep.subr.bf16.mxu0 0
  %496 = vmatpush2.bf16.msra.mxu0 0
  %497 = vmatprep.subr.bf16.mxu0 0
  %498 = vmatpush2.bf16.msra.mxu0 0
  %499 = vmatprep.subr.bf16.mxu0 0
  %500 = vmatpush2.bf16.msra.mxu0 0
  %501 = vmatprep.mubr.bf16.mxu0 0
  %502 = vmatmul.mubr.bf16.gmra.mxu0 %v464
  %v503 = vpop.f32.mrf.mxu0
  %v504 = vadd.f32 0.0, %v503
  %v505 = vpop.f32.mrf.mxu0
  %v506 = vpop.f32.mrf.mxu0
  %v507 = vadd.f32 0.0, %v506
  %v508 = vpop.f32.mrf.mxu0
  %509 = vdwg.mxu0
  %v510 = vadd.f32 %v454, %v504
  %v511 = vadd.f32 %v455, %v507
  %vm512 = vcmask 261120
  %v513 = vsel %vm512, %v510, 0.0
  %514 = vadd.xlane.f32.xlu0 %v513
  %v515 = vpop.xlane.xlu0 %514
  %v516 = vsel %vm512, %v511, 0.0
  %517 = vadd.xlane.f32.xlu0 %v516
  %v518 = vpop.xlane.xlu0 %517
  %v519 = vmul.f32 %v515, 0.03125
  %v520 = vmul.f32 %v518, 0.03125
  %v521 = vsub.f32 %v510, %v519
  %v522 = vsub.f32 %v511, %v520
  %v523 = vmul.f32 %v521, %v521
  %v524 = vmul.f32 %v522, %v522
  %v525 = vsel %vm512, %v523, 0.0
  %526 = vadd.xlane.f32.xlu0 %v525
  %v527 = vpop.xlane.xlu0 %526
  %v528 = vsel %vm512, %v524, 0.0
  %529 = vadd.xlane.f32.xlu0 %v528
  %v530 = vpop.xlane.xlu0 %529
  %v531 = vmul.f32 %v527, 0.03125
  %v532 = vmul.f32 %v530, 0.03125
  %v533 = vadd.f32 %v531, 0.001
  %v534 = vadd.f32 %v532, 0.001
  %v535 = vrsqrt.pop %v533
  %v536 = vrsqrt.pop %v534
  %v537 = vmul.f32 %v521, %v535
  %v538 = vmul.f32 %v522, %v536
  %v539 = vmax.f32 %v537, 0.0
  %v540 = vmax.f32 %v538, 0.0
  %541 = vst.msk [vmem:[%s2] sm:$0xff] %vm512, %v539
  %542 = vst.msk [vmem:[%s2 + $0x8] sm:$0xff] %vm512, %v540
  // Predicated region
  $region10: #{downsample_forward.7} parent=0 // pred_check
    _
  $region11: #{downsample_forward.7} parent=0 // pred_check_branch
    %544 = sbr.rel (0) target = $region13
  $region12: #{downsample_forward.7} parent=0 // pred_region
    _
  $region13: #{downsample_forward.7} parent=0 // pred_fallthru
    _
  // Predicated region
  $region14: #{downsample_forward.7} parent=0 // pred_check
    _
  $region15: #{downsample_forward.7} parent=0 // pred_check_branch
    %546 = sbr.rel (0) target = $region17
  $region16: #{downsample_forward.7} parent=0 // pred_region
    _
  $region17: #{downsample_forward.7} parent=0 // pred_fallthru
    _

</llo_original>
